<compile_context>
chip_gen: v5e
topology: v5e:2x2
jax: 0.10.0
libtpu: 0.0.40
codegen_flags: <defaults>
</compile_context>

<pallas_src>
import functools

import jax
import jax.numpy as jnp
from jax.experimental import pallas as pl
from jax.experimental.pallas import tpu as pltpu

LN_EPS = 1e-5


def _round_up(n, m):
    return ((n + m - 1) // m) * m


def _mlp_head_kernel(x_ref, w1_ref, b1_ref, g_ref, beta_ref, w2_ref, b2_ref,
                     o_ref, *, row_chunk):
    """Fused Linear -> LayerNorm -> ReLU -> Linear over one (tb, C_in) tile.

    Rows are processed in `row_chunk`-row sub-chunks so the (rows, H) f32
    LayerNorm working set stays within the vreg file (no spills) while the
    MXU keeps streaming.
    """
    tb = x_ref.shape[0]
    n_chunks = tb // row_chunk
    inv_h = jnp.float32(1.0 / w1_ref.shape[1])

    # Small per-feature params: a handful of vregs each, load once.
    b1 = b1_ref[...]
    g = g_ref[...]
    beta = beta_ref[...]
    b2 = b2_ref[...]

    def body(c, carry):
        r0 = pl.multiple_of(c * row_chunk, row_chunk)
        x = x_ref[pl.ds(r0, row_chunk), :]

        # Linear 1 on the MXU: native-dtype operands, f32 accumulator.
        h = jnp.dot(x, w1_ref[...], preferred_element_type=jnp.float32) + b1

        # LayerNorm over the hidden (last) dim, entirely in f32.
        # Stats via E[h^2] - mu^2: the two cross-lane reductions are
        # independent (both XLUs usable) and one full (rows, H) VPU pass is
        # saved vs. the diff-then-square form.
        s1 = jnp.sum(h, axis=-1, keepdims=True)
        s2 = jnp.sum(h * h, axis=-1, keepdims=True)
        mu = s1 * inv_h
        var = jnp.maximum(s2 * inv_h - mu * mu, 0.0)
        hn = (h - mu) * jax.lax.rsqrt(var + LN_EPS)
        hn = hn * g + beta

        # ReLU.
        hn = jnp.maximum(hn, 0.0)

        # Linear 2 on the MXU; cast activations to the weight dtype (bf16
        # path when the caller supplies bf16 weights), accumulate in f32.
        out = jnp.dot(hn.astype(w2_ref.dtype), w2_ref[...],
                      preferred_element_type=jnp.float32) + b2
        o_ref[pl.ds(r0, row_chunk), :] = out.astype(o_ref.dtype)
        return carry

    jax.lax.fori_loop(0, n_chunks, body, None, unroll=True)


def _resident_spec(shape, index_map):
    """Grid-invariant operand: resident in VMEM, single-buffered when the
    installed Pallas supports pipeline_mode; falls back to default buffering
    otherwise."""
    try:
        return pl.BlockSpec(shape, index_map, pipeline_mode=pl.Buffered(1))
    except (TypeError, ValueError):
        return pl.BlockSpec(shape, index_map)


def mlp_head_bnm(x, w1, b1, gamma, beta, w2, b2, *, block_rows=256):
    """Fused MLP head.  x: (B, C_in) -> (B, P)."""
    B, C_in = x.shape
    H = w1.shape[1]
    P = w2.shape[1]

    x_bytes = jnp.dtype(x.dtype).itemsize
    w_bytes = jnp.dtype(w1.dtype).itemsize

    # Row tiling: large grid tiles for pipeline efficiency, processed in
    # <=128-row sub-chunks inside the kernel to bound vreg pressure.
    row_align = 16 if x.dtype == jnp.bfloat16 else 8
    tb = min(block_rows, _round_up(B, row_align))
    row_chunk = min(128, tb)
    tb = _round_up(tb, row_chunk)

    # Prefer >=2 grid steps when the batch allows it (v7x megacore: both
    # TensorCores get work under dimension_semantics=("parallel",)).
    if _round_up(B, row_chunk) >= 2 * row_chunk:
        tb = min(tb, _round_up(_round_up(B, row_chunk) // 2, row_chunk))

    # Generation-aware VMEM budget: ~80% of physical VMEM (64 MiB on v7x,
    # 128 MiB on v5e/v6e), leaving headroom for compiler internal scratch.
    try:
        vmem_physical = int(pltpu.get_tpu_info().vmem_capacity_bytes)
    except Exception:  # no TPU info available -> assume the smallest (v7x)
        vmem_physical = 64 * 1024 * 1024
    vmem_cap = int(vmem_physical * 0.8)

    def vmem_estimate(rows):
        return (
            2 * rows * C_in * x_bytes            # x tile (double buffered)
            + 2 * rows * P * x_bytes             # out tile (double buffered)
            + (C_in * H + H * P) * w_bytes       # weights, single buffered
            + (3 * H + P) * 4                    # biases / LN params
            + 4 * row_chunk * H * 4              # f32 LN working set (approx)
        )

    # Shrink the row tile if the estimated footprint exceeds the budget.
    while vmem_estimate(tb) > vmem_cap and tb > row_chunk:
        tb = max(row_chunk, _round_up(tb // 2, row_chunk))
    # TODO(synk): if the single-buffered weights alone exceed the VMEM budget
    # (very large hidden sizes), add a grid axis over H (N of matmul1 / K of
    # matmul2) with a (tb, P) f32 scratch accumulator marked "arbitrary"
    # instead of keeping both weights fully resident.

    vmem_limit = int(min(vmem_cap,
                         max(2 * vmem_estimate(tb), 16 * 1024 * 1024)))

    # Zero-pad ragged batches to a multiple of the row tile (sliced off at
    # the end).  Padded rows flow through LN safely (var + eps > 0).
    Bp = _round_up(B, tb)
    if Bp != B:
        x = jnp.pad(x, ((0, Bp - B), (0, 0)))
    grid = (Bp // tb,)

    # Biases / LN params as (1, dim) 2-D f32 arrays (TPU-friendly layout).
    b1_2d = b1.reshape(1, H).astype(jnp.float32)
    g_2d = gamma.reshape(1, H).astype(jnp.float32)
    beta_2d = beta.reshape(1, H).astype(jnp.float32)
    b2_2d = b2.reshape(1, P).astype(jnp.float32)

    const_map = lambda i: (0, 0)

    cost = pl.CostEstimate(
        flops=2 * Bp * (C_in * H + H * P),
        transcendentals=Bp,                       # one rsqrt per row
        bytes_accessed=(Bp * C_in * x_bytes + Bp * P * x_bytes
                        + (C_in * H + H * P) * w_bytes + (3 * H + P) * 4),
    )

    out = pl.pallas_call(
        functools.partial(_mlp_head_kernel, row_chunk=row_chunk),
        out_shape=jax.ShapeDtypeStruct((Bp, P), x.dtype),
        grid_spec=pltpu.PrefetchScalarGridSpec(
            num_scalar_prefetch=0,
            grid=grid,
            in_specs=[
                pl.BlockSpec((tb, C_in), lambda i: (i, 0)),   # x tile
                _resident_spec((C_in, H), const_map),          # w1
                _resident_spec((1, H), const_map),             # b1
                _resident_spec((1, H), const_map),             # gamma
                _resident_spec((1, H), const_map),             # beta
                _resident_spec((H, P), const_map),              # w2
                _resident_spec((1, P), const_map),              # b2
            ],
            out_specs=pl.BlockSpec((tb, P), lambda i: (i, 0)),
        ),
        compiler_params=pltpu.CompilerParams(
            dimension_semantics=("parallel",),
            vmem_limit_bytes=vmem_limit,
        ),
        cost_estimate=cost,
    )(x, w1, b1_2d, g_2d, beta_2d, w2, b2_2d)

    if Bp != B:
        out = out[:B]
    return out


def reference_mlp_head(x, w1, b1, gamma, beta, w2, b2):
    h = x.astype(jnp.float32) @ w1.astype(jnp.float32) + b1
    mu = jnp.mean(h, axis=-1, keepdims=True)
    var = jnp.mean((h - mu) ** 2, axis=-1, keepdims=True)
    h = (h - mu) / jnp.sqrt(var + LN_EPS)
    h = h * gamma + beta
    h = jnp.maximum(h, 0.0)
    return h @ w2.astype(jnp.float32) + b2


if __name__ == "__main__":
    # Lane-dense (multiples of 128), small demo shapes consistent with the
    # module: x is (batch, in_channels).
    B = 512           # batch (rows) -> grid of 2 steps at block_rows=256
    C_IN = 128        # in_channels
    HID = 256         # mlp_hidden_size
    PROJ = 128        # projection_size

    key = jax.random.PRNGKey(0)
    kx, kw1, kb1, kw2, kb2 = jax.random.split(key, 5)

    x = jax.random.normal(kx, (B, C_IN), dtype=jnp.float32)

    # Deterministic synthetic parameters (stored as (in, out)).
    w1 = jax.random.normal(kw1, (C_IN, HID), dtype=jnp.float32) * 0.05
    b1 = jax.random.normal(kb1, (HID,), dtype=jnp.float32) * 0.01
    gamma = jnp.ones((HID,), dtype=jnp.float32)      # LayerNorm weight init
    beta = jnp.zeros((HID,), dtype=jnp.float32)      # LayerNorm bias init
    w2 = jax.random.normal(kw2, (HID, PROJ), dtype=jnp.float32) * 0.05
    b2 = jax.random.normal(kb2, (PROJ,), dtype=jnp.float32) * 0.01

    fn = jax.jit(functools.partial(mlp_head_bnm, block_rows=256))
    out = jax.block_until_ready(fn(x, w1, b1, gamma, beta, w2, b2))

    ref = reference_mlp_head(x, w1, b1, gamma, beta, w2, b2)
    assert out.shape == (B, PROJ)
    assert jnp.allclose(out, ref, atol=1e-3, rtol=1e-3), "mismatch vs reference"

    # Also exercise the ragged-batch (padding) path once.
    out_ragged = jax.block_until_ready(
        mlp_head_bnm(x[:37], w1, b1, gamma, beta, w2, b2, block_rows=256))
    assert out_ragged.shape == (37, PROJ)
    assert jnp.allclose(out_ragged, ref[:37], atol=1e-3, rtol=1e-3)

    print("KERNEL_OK")
</pallas_src>

<mosaic_0001>
module attributes {stable_mosaic.version = 11 : i64} {
  func.func @_mlp_head_kernel(%arg0: i32, %arg1: memref<256x128xf32, #tpu.memory_space<vmem>>, %arg2: memref<128x256xf32, #tpu.memory_space<vmem>>, %arg3: memref<1x256xf32, #tpu.memory_space<vmem>>, %arg4: memref<1x256xf32, #tpu.memory_space<vmem>>, %arg5: memref<1x256xf32, #tpu.memory_space<vmem>>, %arg6: memref<256x128xf32, #tpu.memory_space<vmem>>, %arg7: memref<1x128xf32, #tpu.memory_space<vmem>>, %arg8: memref<256x128xf32, #tpu.memory_space<vmem>>) attributes {dimension_semantics = [#tpu.dimension_semantics<parallel>], iteration_bounds = array<i64: 2>, scalar_prefetch = 0 : i64, scratch_operands = 0 : i64, tpu.core_type = #tpu.core_type<tc>, window_params = [{transform_indices = @transform_0, window_bounds = array<i64: 256, 128>}, {pipeline_mode = #tpu.pipeline_mode<synchronous>, transform_indices = @transform_1, window_bounds = array<i64: 128, 256>}, {pipeline_mode = #tpu.pipeline_mode<synchronous>, transform_indices = @transform_2, window_bounds = array<i64: 1, 256>}, {pipeline_mode = #tpu.pipeline_mode<synchronous>, transform_indices = @transform_3, window_bounds = array<i64: 1, 256>}, {pipeline_mode = #tpu.pipeline_mode<synchronous>, transform_indices = @transform_4, window_bounds = array<i64: 1, 256>}, {pipeline_mode = #tpu.pipeline_mode<synchronous>, transform_indices = @transform_5, window_bounds = array<i64: 256, 128>}, {pipeline_mode = #tpu.pipeline_mode<synchronous>, transform_indices = @transform_6, window_bounds = array<i64: 1, 128>}, {transform_indices = @transform_7, window_bounds = array<i64: 256, 128>}]} {
    %c0 = arith.constant 0 : index
    %c0_0 = arith.constant 0 : index
    %0 = vector.load %arg3[%c0, %c0_0] : memref<1x256xf32, #tpu.memory_space<vmem>>, vector<1x256xf32>
    %c0_1 = arith.constant 0 : index
    %c0_2 = arith.constant 0 : index
    %1 = vector.load %arg4[%c0_1, %c0_2] : memref<1x256xf32, #tpu.memory_space<vmem>>, vector<1x256xf32>
    %c0_3 = arith.constant 0 : index
    %c0_4 = arith.constant 0 : index
    %2 = vector.load %arg5[%c0_3, %c0_4] : memref<1x256xf32, #tpu.memory_space<vmem>>, vector<1x256xf32>
    %c0_5 = arith.constant 0 : index
    %c0_6 = arith.constant 0 : index
    %3 = vector.load %arg7[%c0_5, %c0_6] : memref<1x128xf32, #tpu.memory_space<vmem>>, vector<1x128xf32>
    %cst = arith.constant 3.906250e-03 : f32
    %c0_i32 = arith.constant 0 : i32
    %c128_i32 = arith.constant 128 : i32
    %4 = arith.muli %c0_i32, %c128_i32 : i32
    %5 = tpu.assume_multiple %4, 128 : i32
    %6 = arith.index_cast %5 : i32 to index
    %c0_7 = arith.constant 0 : index
    %7 = vector.load %arg1[%6, %c0_7] : memref<256x128xf32, #tpu.memory_space<vmem>>, vector<128x128xf32>
    %c0_8 = arith.constant 0 : index
    %c0_9 = arith.constant 0 : index
    %8 = vector.load %arg2[%c0_8, %c0_9] : memref<128x256xf32, #tpu.memory_space<vmem>>, vector<128x256xf32>
    %cst_10 = arith.constant dense<0.000000e+00> : vector<128x256xf32>
    %9 = tpu.matmul %7, %8, %cst_10 {dimension_numbers = #tpu.dot_dimension_numbers<[1], [0], [0], [1], [0, 0, 1, 1], [], []>} : vector<128x128xf32>, vector<128x256xf32>, vector<128x256xf32> -> vector<128x256xf32>
    %10 = vector.broadcast %0 : vector<1x256xf32> to vector<128x256xf32>
    %11 = arith.addf %9, %10 : vector<128x256xf32>
    %cst_11 = arith.constant dense<0.000000e+00> : vector<128xf32>
    %12 = vector.multi_reduction <add>, %11, %cst_11 [1] : vector<128x256xf32> to vector<128xf32>
    %13 = vector.shape_cast %12 : vector<128xf32> to vector<128x1xf32>
    %14 = arith.mulf %11, %11 : vector<128x256xf32>
    %cst_12 = arith.constant dense<0.000000e+00> : vector<128xf32>
    %15 = vector.multi_reduction <add>, %14, %cst_12 [1] : vector<128x256xf32> to vector<128xf32>
    %16 = vector.shape_cast %15 : vector<128xf32> to vector<128x1xf32>
    %17 = vector.broadcast %cst : f32 to vector<128x1xf32>
    %18 = arith.mulf %13, %17 : vector<128x1xf32>
    %19 = vector.broadcast %cst : f32 to vector<128x1xf32>
    %20 = arith.mulf %16, %19 : vector<128x1xf32>
    %21 = arith.mulf %18, %18 : vector<128x1xf32>
    %22 = arith.subf %20, %21 : vector<128x1xf32>
    %cst_13 = arith.constant 0.000000e+00 : f32
    %23 = vector.broadcast %cst_13 : f32 to vector<128x1xf32>
    %24 = arith.maximumf %22, %23 : vector<128x1xf32>
    %25 = vector.broadcast %18 : vector<128x1xf32> to vector<128x256xf32>
    %26 = arith.subf %11, %25 : vector<128x256xf32>
    %cst_14 = arith.constant 9.99999974E-6 : f32
    %27 = vector.broadcast %cst_14 : f32 to vector<128x1xf32>
    %28 = arith.addf %24, %27 : vector<128x1xf32>
    %29 = math.rsqrt %28 : vector<128x1xf32>
    %30 = vector.broadcast %29 : vector<128x1xf32> to vector<128x256xf32>
    %31 = arith.mulf %26, %30 : vector<128x256xf32>
    %32 = vector.broadcast %1 : vector<1x256xf32> to vector<128x256xf32>
    %33 = arith.mulf %31, %32 : vector<128x256xf32>
    %34 = vector.broadcast %2 : vector<1x256xf32> to vector<128x256xf32>
    %35 = arith.addf %33, %34 : vector<128x256xf32>
    %cst_15 = arith.constant 0.000000e+00 : f32
    %36 = vector.broadcast %cst_15 : f32 to vector<128x256xf32>
    %37 = arith.maximumf %35, %36 : vector<128x256xf32>
    %c0_16 = arith.constant 0 : index
    %c0_17 = arith.constant 0 : index
    %38 = vector.load %arg6[%c0_16, %c0_17] : memref<256x128xf32, #tpu.memory_space<vmem>>, vector<256x128xf32>
    %cst_18 = arith.constant dense<0.000000e+00> : vector<128x128xf32>
    %39 = tpu.matmul %37, %38, %cst_18 {dimension_numbers = #tpu.dot_dimension_numbers<[1], [0], [0], [1], [0, 0, 1, 1], [], []>} : vector<128x256xf32>, vector<256x128xf32>, vector<128x128xf32> -> vector<128x128xf32>
    %40 = vector.broadcast %3 : vector<1x128xf32> to vector<128x128xf32>
    %41 = arith.addf %39, %40 : vector<128x128xf32>
    %42 = arith.index_cast %5 : i32 to index
    %c0_19 = arith.constant 0 : index
    %43 = vector.load %arg8[%42, %c0_19] : memref<256x128xf32, #tpu.memory_space<vmem>>, vector<128x128xf32>
    tpu.vector_store %arg8[%42, %c0_19], %41 {strides = array<i32>} : memref<256x128xf32, #tpu.memory_space<vmem>>, vector<128x128xf32>,
    %c1_i32 = arith.constant 1 : i32
    %c128_i32_20 = arith.constant 128 : i32
    %44 = arith.muli %c1_i32, %c128_i32_20 : i32
    %45 = tpu.assume_multiple %44, 128 : i32
    %46 = arith.index_cast %45 : i32 to index
    %c0_21 = arith.constant 0 : index
    %47 = vector.load %arg1[%46, %c0_21] : memref<256x128xf32, #tpu.memory_space<vmem>>, vector<128x128xf32>
    %c0_22 = arith.constant 0 : index
    %c0_23 = arith.constant 0 : index
    %48 = vector.load %arg2[%c0_22, %c0_23] : memref<128x256xf32, #tpu.memory_space<vmem>>, vector<128x256xf32>
    %cst_24 = arith.constant dense<0.000000e+00> : vector<128x256xf32>
    %49 = tpu.matmul %47, %48, %cst_24 {dimension_numbers = #tpu.dot_dimension_numbers<[1], [0], [0], [1], [0, 0, 1, 1], [], []>} : vector<128x128xf32>, vector<128x256xf32>, vector<128x256xf32> -> vector<128x256xf32>
    %50 = vector.broadcast %0 : vector<1x256xf32> to vector<128x256xf32>
    %51 = arith.addf %49, %50 : vector<128x256xf32>
    %cst_25 = arith.constant dense<0.000000e+00> : vector<128xf32>
    %52 = vector.multi_reduction <add>, %51, %cst_25 [1] : vector<128x256xf32> to vector<128xf32>
    %53 = vector.shape_cast %52 : vector<128xf32> to vector<128x1xf32>
    %54 = arith.mulf %51, %51 : vector<128x256xf32>
    %cst_26 = arith.constant dense<0.000000e+00> : vector<128xf32>
    %55 = vector.multi_reduction <add>, %54, %cst_26 [1] : vector<128x256xf32> to vector<128xf32>
    %56 = vector.shape_cast %55 : vector<128xf32> to vector<128x1xf32>
    %57 = vector.broadcast %cst : f32 to vector<128x1xf32>
    %58 = arith.mulf %53, %57 : vector<128x1xf32>
    %59 = vector.broadcast %cst : f32 to vector<128x1xf32>
    %60 = arith.mulf %56, %59 : vector<128x1xf32>
    %61 = arith.mulf %58, %58 : vector<128x1xf32>
    %62 = arith.subf %60, %61 : vector<128x1xf32>
    %cst_27 = arith.constant 0.000000e+00 : f32
    %63 = vector.broadcast %cst_27 : f32 to vector<128x1xf32>
    %64 = arith.maximumf %62, %63 : vector<128x1xf32>
    %65 = vector.broadcast %58 : vector<128x1xf32> to vector<128x256xf32>
    %66 = arith.subf %51, %65 : vector<128x256xf32>
    %cst_28 = arith.constant 9.99999974E-6 : f32
    %67 = vector.broadcast %cst_28 : f32 to vector<128x1xf32>
    %68 = arith.addf %64, %67 : vector<128x1xf32>
    %69 = math.rsqrt %68 : vector<128x1xf32>
    %70 = vector.broadcast %69 : vector<128x1xf32> to vector<128x256xf32>
    %71 = arith.mulf %66, %70 : vector<128x256xf32>
    %72 = vector.broadcast %1 : vector<1x256xf32> to vector<128x256xf32>
    %73 = arith.mulf %71, %72 : vector<128x256xf32>
    %74 = vector.broadcast %2 : vector<1x256xf32> to vector<128x256xf32>
    %75 = arith.addf %73, %74 : vector<128x256xf32>
    %cst_29 = arith.constant 0.000000e+00 : f32
    %76 = vector.broadcast %cst_29 : f32 to vector<128x256xf32>
    %77 = arith.maximumf %75, %76 : vector<128x256xf32>
    %c0_30 = arith.constant 0 : index
    %c0_31 = arith.constant 0 : index
    %78 = vector.load %arg6[%c0_30, %c0_31] : memref<256x128xf32, #tpu.memory_space<vmem>>, vector<256x128xf32>
    %cst_32 = arith.constant dense<0.000000e+00> : vector<128x128xf32>
    %79 = tpu.matmul %77, %78, %cst_32 {dimension_numbers = #tpu.dot_dimension_numbers<[1], [0], [0], [1], [0, 0, 1, 1], [], []>} : vector<128x256xf32>, vector<256x128xf32>, vector<128x128xf32> -> vector<128x128xf32>
    %80 = vector.broadcast %3 : vector<1x128xf32> to vector<128x128xf32>
    %81 = arith.addf %79, %80 : vector<128x128xf32>
    %82 = arith.index_cast %45 : i32 to index
    %c0_33 = arith.constant 0 : index
    %83 = vector.load %arg8[%82, %c0_33] : memref<256x128xf32, #tpu.memory_space<vmem>>, vector<128x128xf32>
    tpu.vector_store %arg8[%82, %c0_33], %81 {strides = array<i32>} : memref<256x128xf32, #tpu.memory_space<vmem>>, vector<128x128xf32>,
    %c2_i32 = arith.constant 2 : i32
    return
  }
  func.func @transform_0(%arg0: i32) -> (i32, i32) {
    %c0_i32 = arith.constant 0 : i32
    %c0_i32_0 = arith.constant 0 : i32
    return %arg0, %c0_i32 : i32, i32
  }
  func.func @transform_1(%arg0: i32) -> (i32, i32) {
    %c0_i32 = arith.constant 0 : i32
    %c0_i32_0 = arith.constant 0 : i32
    %c0_i32_1 = arith.constant 0 : i32
    return %c0_i32, %c0_i32_0 : i32, i32
  }
  func.func @transform_2(%arg0: i32) -> (i32, i32) {
    %c0_i32 = arith.constant 0 : i32
    %c0_i32_0 = arith.constant 0 : i32
    %c0_i32_1 = arith.constant 0 : i32
    return %c0_i32, %c0_i32_0 : i32, i32
  }
  func.func @transform_3(%arg0: i32) -> (i32, i32) {
    %c0_i32 = arith.constant 0 : i32
    %c0_i32_0 = arith.constant 0 : i32
    %c0_i32_1 = arith.constant 0 : i32
    return %c0_i32, %c0_i32_0 : i32, i32
  }
  func.func @transform_4(%arg0: i32) -> (i32, i32) {
    %c0_i32 = arith.constant 0 : i32
    %c0_i32_0 = arith.constant 0 : i32
    %c0_i32_1 = arith.constant 0 : i32
    return %c0_i32, %c0_i32_0 : i32, i32
  }
  func.func @transform_5(%arg0: i32) -> (i32, i32) {
    %c0_i32 = arith.constant 0 : i32
    %c0_i32_0 = arith.constant 0 : i32
    %c0_i32_1 = arith.constant 0 : i32
    return %c0_i32, %c0_i32_0 : i32, i32
  }
  func.func @transform_6(%arg0: i32) -> (i32, i32) {
    %c0_i32 = arith.constant 0 : i32
    %c0_i32_0 = arith.constant 0 : i32
    %c0_i32_1 = arith.constant 0 : i32
    return %c0_i32, %c0_i32_0 : i32, i32
  }
  func.func @transform_7(%arg0: i32) -> (i32, i32) {
    %c0_i32 = arith.constant 0 : i32
    %c0_i32_0 = arith.constant 0 : i32
    return %arg0, %c0_i32 : i32, i32
  }
}

</mosaic_0001>

<llo_original>
// kernel: mlp_head_bnm.1
$region0: #{mlp_head_bnm.1}
  #allocation0 [shape = 'u32[]', space=smem, size = 0x4, offset = 0x4, fixed_abs, tag = 'smem constant byte address 0x4 - core index']
  #allocation1 [shape = 'u32[72,128]{1,0:T(1,128)}', space=vmem, size = 0x9000, scoped, tag = 'internal scratch']
  %s0 = inlined_call_operand.hbm [shape: f32[512,128], index: 0, kind: input, shape index: {}]
  %s1 = inlined_call_operand.hbm [shape: f32[128,256], index: 1, kind: input, shape index: {}]
  %s2 = inlined_call_operand.vmem [shape: f32[1,256], index: 2, kind: input, shape index: {}]
  %s3 = inlined_call_operand.vmem [shape: f32[1,256], index: 3, kind: input, shape index: {}]
  %s4 = inlined_call_operand.vmem [shape: f32[1,256], index: 4, kind: input, shape index: {}]
  %s5 = inlined_call_operand.hbm [shape: f32[256,128], index: 5, kind: input, shape index: {}]
  %s6 = inlined_call_operand.vmem [shape: f32[1,128], index: 6, kind: input, shape index: {}]
  %s7 = inlined_call_operand.hbm [shape: f32[512,128], index: 7, kind: output, shape index: {}]
  %s8 = sld [smem:[#allocation0]]
  $region73: #{mlp_head_bnm.1} parent=0
    _
  %s10 = ssub.s32 1, %s8
  %s11 = scalar_select 0, %s10, %s8
  $region1: #{mlp_head_bnm.1} parent=0
    #allocation2 [shape = 'u8[262144]{0}', space=vmem, size = 0x40000, scoped, tag = 'input window, operand 0']
    #allocation3 [shape = 's32[2]{0}', space=sflag, size = 0x8, scoped, tag = 'scoped memory for mlp_head_bnm.1']
    #allocation4 [shape = 's32[2]{0}', space=sflag, size = 0x8, scoped, tag = 'scoped memory for mlp_head_bnm.1']
    #allocation5 [shape = 'u8[131072]{0}', space=vmem, size = 0x20000, scoped, tag = 'input window, operand 1, single buffered']
    #allocation6 [shape = 's32[1]{0}', space=sflag, size = 0x4, scoped, tag = 'scoped memory for mlp_head_bnm.1']
    #allocation7 [shape = 'u8[131072]{0}', space=vmem, size = 0x20000, scoped, tag = 'input window, operand 5, single buffered']
    #allocation8 [shape = 'u8[262144]{0}', space=vmem, size = 0x40000, scoped, tag = 'output window, operand 0']
    %12 = vsyncpa [#allocation3], 0
    %s13 = scalar_lea.sflag [#allocation3], 1
    %14 = vsyncpa %s13, 0
    %15 = vsyncpa [#allocation6], 0
    %16 = vsyncpa [#allocation4], 0
    %s17 = scalar_lea.sflag [#allocation4], 1
    %18 = vsyncpa %s17, 0
    loop: start=0, step=1, limit=4
    $region2: #{mlp_head_bnm.1} parent=1 // loop_pre_header
      _
    $region3: #{mlp_head_bnm.1} parent=1 // loop_header
      %s20 = sphi 0, %s24
      %p21 = scmp.ge.s32.totalorder %s20, 4
      %s30 = sphi 0, %s32
      %s33 = sphi 0, %s30
      %s34 = sphi 0, %s33
      %s50 = sphi 0, %s34
      %s54 = sphi 0, %s54
      %s56 = sphi 0, %s54
      %s57 = sphi 0, %s56
      %s71 = sphi 0, %s57
      %s75 = sphi 0, %s75
      %s77 = sphi 0, %s75
      %s78 = sphi 0, %s77
      %s92 = sphi 0, %s78
      %s96 = sphi 0, %s96
      %s98 = sphi 0, %s96
      %s99 = sphi 0, %s98
      %s113 = sphi 0, %s99
      %s117 = sphi 0, %s117
      %s119 = sphi 0, %s117
      %s120 = sphi 0, %s119
      %s134 = sphi 0, %s120
      %s138 = sphi 0, %s138
      %s140 = sphi 0, %s138
      %s141 = sphi 0, %s140
      %s155 = sphi 0, %s141
      %s159 = sphi 0, %s159
      %s161 = sphi 0, %s159
      %s162 = sphi 0, %s161
      %s176 = sphi 0, %s162
      %s182 = sphi 0, %s184
      %s185 = sphi 0, %s182
      %s186 = sphi 0, %s185
      %s202 = sphi 0, %s186
    $region4: #{mlp_head_bnm.1} parent=1 // loop_header_branch
      %23 = sbr.rel (%p21) target = $region8
    $region5: #{mlp_head_bnm.1} parent=1 // loop_body
      %s25 = ssub.s32 %s20, 1
      %s26 = ssub.s32 %s20, 2
      %s27 = sadd.s32 %s20, 1
      %s28 = ssub.s32 %s20, %s27
      %p29 = scmp.eq.s32.totalorder %s28, 0
      %s31 = sadd.s32 %s30, 1
      %s32 = scalar_select %p29, %s30, %s31
      %p35 = pneg %p29
      %p36 = scmp.eq.s32.totalorder %s20, 1
      %p37 = por %p35, %p36
      %p38 = scmp.ne.s32.totalorder %s30, %s33
      %p39 = scmp.eq.s32.totalorder %s20, 0
      %p40 = por %p38, %p39
      %p41 = scmp.ne.s32.totalorder %s30, %s33
      %p42 = scmp.eq.s32.totalorder %s25, 1
      %p43 = por %p41, %p42
      %p44 = scmp.ne.s32.totalorder %s33, %s34
      %p45 = scmp.eq.s32.totalorder %s25, 0
      %p46 = por %p44, %p45
      %p47 = scmp.ne.s32.totalorder %s33, %s34
      %p48 = scmp.eq.s32.totalorder %s26, 1
      %p49 = por %p47, %p48
      %p51 = scmp.ne.s32.totalorder %s34, %s50
      %p52 = scmp.eq.s32.totalorder %s26, 0
      %p53 = por %p51, %p52
      %s55 = sadd.s32 %s54, 1
      %p58 = scmp.eq.s32.totalorder %s20, 1
      %p59 = scmp.ne.s32.totalorder %s54, %s56
      %p60 = scmp.eq.s32.totalorder %s20, 0
      %p61 = por %p59, %p60
      %p62 = scmp.ne.s32.totalorder %s54, %s56
      %p63 = scmp.eq.s32.totalorder %s25, 1
      %p64 = por %p62, %p63
      %p65 = scmp.ne.s32.totalorder %s56, %s57
      %p66 = scmp.eq.s32.totalorder %s25, 0
      %p67 = por %p65, %p66
      %p68 = scmp.ne.s32.totalorder %s56, %s57
      %p69 = scmp.eq.s32.totalorder %s26, 1
      %p70 = por %p68, %p69
      %p72 = scmp.ne.s32.totalorder %s57, %s71
      %p73 = scmp.eq.s32.totalorder %s26, 0
      %p74 = por %p72, %p73
      %s76 = sadd.s32 %s75, 1
      %p79 = scmp.eq.s32.totalorder %s20, 1
      %p80 = scmp.ne.s32.totalorder %s75, %s77
      %p81 = scmp.eq.s32.totalorder %s20, 0
      %p82 = por %p80, %p81
      %p83 = scmp.ne.s32.totalorder %s75, %s77
      %p84 = scmp.eq.s32.totalorder %s25, 1
      %p85 = por %p83, %p84
      %p86 = scmp.ne.s32.totalorder %s77, %s78
      %p87 = scmp.eq.s32.totalorder %s25, 0
      %p88 = por %p86, %p87
      %p89 = scmp.ne.s32.totalorder %s77, %s78
      %p90 = scmp.eq.s32.totalorder %s26, 1
      %p91 = por %p89, %p90
      %p93 = scmp.ne.s32.totalorder %s78, %s92
      %p94 = scmp.eq.s32.totalorder %s26, 0
      %p95 = por %p93, %p94
      %s97 = sadd.s32 %s96, 1
      %p100 = scmp.eq.s32.totalorder %s20, 1
      %p101 = scmp.ne.s32.totalorder %s96, %s98
      %p102 = scmp.eq.s32.totalorder %s20, 0
      %p103 = por %p101, %p102
      %p104 = scmp.ne.s32.totalorder %s96, %s98
      %p105 = scmp.eq.s32.totalorder %s25, 1
      %p106 = por %p104, %p105
      %p107 = scmp.ne.s32.totalorder %s98, %s99
      %p108 = scmp.eq.s32.totalorder %s25, 0
      %p109 = por %p107, %p108
      %p110 = scmp.ne.s32.totalorder %s98, %s99
      %p111 = scmp.eq.s32.totalorder %s26, 1
      %p112 = por %p110, %p111
      %p114 = scmp.ne.s32.totalorder %s99, %s113
      %p115 = scmp.eq.s32.totalorder %s26, 0
      %p116 = por %p114, %p115
      %s118 = sadd.s32 %s117, 1
      %p121 = scmp.eq.s32.totalorder %s20, 1
      %p122 = scmp.ne.s32.totalorder %s117, %s119
      %p123 = scmp.eq.s32.totalorder %s20, 0
      %p124 = por %p122, %p123
      %p125 = scmp.ne.s32.totalorder %s117, %s119
      %p126 = scmp.eq.s32.totalorder %s25, 1
      %p127 = por %p125, %p126
      %p128 = scmp.ne.s32.totalorder %s119, %s120
      %p129 = scmp.eq.s32.totalorder %s25, 0
      %p130 = por %p128, %p129
      %p131 = scmp.ne.s32.totalorder %s119, %s120
      %p132 = scmp.eq.s32.totalorder %s26, 1
      %p133 = por %p131, %p132
      %p135 = scmp.ne.s32.totalorder %s120, %s134
      %p136 = scmp.eq.s32.totalorder %s26, 0
      %p137 = por %p135, %p136
      %s139 = sadd.s32 %s138, 1
      %p142 = scmp.eq.s32.totalorder %s20, 1
      %p143 = scmp.ne.s32.totalorder %s138, %s140
      %p144 = scmp.eq.s32.totalorder %s20, 0
      %p145 = por %p143, %p144
      %p146 = scmp.ne.s32.totalorder %s138, %s140
      %p147 = scmp.eq.s32.totalorder %s25, 1
      %p148 = por %p146, %p147
      %p149 = scmp.ne.s32.totalorder %s140, %s141
      %p150 = scmp.eq.s32.totalorder %s25, 0
      %p151 = por %p149, %p150
      %p152 = scmp.ne.s32.totalorder %s140, %s141
      %p153 = scmp.eq.s32.totalorder %s26, 1
      %p154 = por %p152, %p153
      %p156 = scmp.ne.s32.totalorder %s141, %s155
      %p157 = scmp.eq.s32.totalorder %s26, 0
      %p158 = por %p156, %p157
      %s160 = sadd.s32 %s159, 1
      %p163 = scmp.eq.s32.totalorder %s20, 1
      %p164 = scmp.ne.s32.totalorder %s159, %s161
      %p165 = scmp.eq.s32.totalorder %s20, 0
      %p166 = por %p164, %p165
      %p167 = scmp.ne.s32.totalorder %s159, %s161
      %p168 = scmp.eq.s32.totalorder %s25, 1
      %p169 = por %p167, %p168
      %p170 = scmp.ne.s32.totalorder %s161, %s162
      %p171 = scmp.eq.s32.totalorder %s25, 0
      %p172 = por %p170, %p171
      %p173 = scmp.ne.s32.totalorder %s161, %s162
      %p174 = scmp.eq.s32.totalorder %s26, 1
      %p175 = por %p173, %p174
      %p177 = scmp.ne.s32.totalorder %s162, %s176
      %p178 = scmp.eq.s32.totalorder %s26, 0
      %p179 = por %p177, %p178
      %s180 = ssub.s32 %s20, %s27
      %p181 = scmp.eq.s32.totalorder %s180, 0
      %s183 = sadd.s32 %s182, 1
      %s184 = scalar_select %p181, %s182, %s183
      %p187 = pneg %p181
      %p188 = scmp.eq.s32.totalorder %s20, 1
      %p189 = por %p187, %p188
      %p190 = scmp.ne.s32.totalorder %s182, %s185
      %p191 = scmp.eq.s32.totalorder %s20, 0
      %p192 = por %p190, %p191
      %p193 = scmp.ne.s32.totalorder %s182, %s185
      %p194 = scmp.eq.s32.totalorder %s25, 1
      %p195 = por %p193, %p194
      %p196 = scmp.ne.s32.totalorder %s185, %s186
      %p197 = scmp.eq.s32.totalorder %s25, 0
      %p198 = por %p196, %p197
      %p199 = scmp.ne.s32.totalorder %s185, %s186
      %p200 = scmp.eq.s32.totalorder %s26, 1
      %p201 = por %p199, %p200
      %p203 = scmp.ne.s32.totalorder %s186, %s202
      %p204 = scmp.eq.s32.totalorder %s26, 0
      %p205 = por %p203, %p204
      %p206 = scmp.le.s32.totalorder 1, %s20
      %p207 = scmp.lt.s32.totalorder %s20, 3
      %p208 = pnand %p206, %p207
      %p209 = pneg %p208
      // Predicated region
      $region9: #{mlp_head_bnm.1} parent=5 // pred_check
        _
      $region10: #{mlp_head_bnm.1} parent=5 // pred_check_branch
        %211 = sbr.rel (%p208) target = $region12
      $region11: #{mlp_head_bnm.1} parent=5 // pred_region
        %s212 = ssub.s32 %s20, 1
        // Predicated region
        $region13: #{mlp_head_bnm.1} parent=11 // pred_check
          %p213 = pneg %p67
        $region14: #{mlp_head_bnm.1} parent=11 // pred_check_branch
          %215 = sbr.rel (%p213) target = $region16
        $region15: #{mlp_head_bnm.1} parent=11 // pred_region
          %217 = vsyncadd [#allocation6], 0
          %s218 = sshll.u32 %s1, 4
          %s219 = int_to_ptr.hbm [resolvable:$true] %s218
          %s220 = sshll.u32 [#allocation5], 4
          %s221 = int_to_ptr.vmem [resolvable:$true] %s220
          %226 = dma.hbm_to_vmem [thread:$0]  %s219, 4096, %s221, [#allocation6], 256, 256, 16
        $region16: #{mlp_head_bnm.1} parent=11 // pred_fallthru
          _
        // Predicated region
        $region17: #{mlp_head_bnm.1} parent=11 // pred_check
          %p227 = pneg %p88
        $region18: #{mlp_head_bnm.1} parent=11 // pred_check_branch
          %229 = sbr.rel (%p227) target = $region20
        $region19: #{mlp_head_bnm.1} parent=11 // pred_region
          _
        $region20: #{mlp_head_bnm.1} parent=11 // pred_fallthru
          _
        // Predicated region
        $region21: #{mlp_head_bnm.1} parent=11 // pred_check
          %p230 = pneg %p109
        $region22: #{mlp_head_bnm.1} parent=11 // pred_check_branch
          %232 = sbr.rel (%p230) target = $region24
        $region23: #{mlp_head_bnm.1} parent=11 // pred_region
          _
        $region24: #{mlp_head_bnm.1} parent=11 // pred_fallthru
          _
        // Predicated region
        $region25: #{mlp_head_bnm.1} parent=11 // pred_check
          %p233 = pneg %p130
        $region26: #{mlp_head_bnm.1} parent=11 // pred_check_branch
          %235 = sbr.rel (%p233) target = $region28
        $region27: #{mlp_head_bnm.1} parent=11 // pred_region
          _
        $region28: #{mlp_head_bnm.1} parent=11 // pred_fallthru
          _
        // Predicated region
        $region29: #{mlp_head_bnm.1} parent=11 // pred_check
          %p236 = pneg %p151
        $region30: #{mlp_head_bnm.1} parent=11 // pred_check_branch
          %238 = sbr.rel (%p236) target = $region32
        $region31: #{mlp_head_bnm.1} parent=11 // pred_region
          %240 = vsyncadd [#allocation6], 0
          %s241 = sshll.u32 %s5, 4
          %s242 = int_to_ptr.hbm [resolvable:$true] %s241
          %s243 = sshll.u32 [#allocation7], 4
          %s244 = int_to_ptr.vmem [resolvable:$true] %s243
          %249 = dma.hbm_to_vmem [thread:$0]  %s242, 4096, %s244, [#allocation6], 128, 128, 8
        $region32: #{mlp_head_bnm.1} parent=11 // pred_fallthru
          _
        // Predicated region
        $region33: #{mlp_head_bnm.1} parent=11 // pred_check
          %p250 = pneg %p172
        $region34: #{mlp_head_bnm.1} parent=11 // pred_check_branch
          %252 = sbr.rel (%p250) target = $region36
        $region35: #{mlp_head_bnm.1} parent=11 // pred_region
          _
        $region36: #{mlp_head_bnm.1} parent=11 // pred_fallthru
          _
      $region12: #{mlp_head_bnm.1} parent=5 // pred_fallthru
        _
      %p253 = scmp.lt.s32.totalorder %s20, 2
      // Predicated region
      $region37: #{mlp_head_bnm.1} parent=5 // pred_check
        %p254 = pneg %p253
      $region38: #{mlp_head_bnm.1} parent=5 // pred_check_branch
        %256 = sbr.rel (%p254) target = $region40
      $region39: #{mlp_head_bnm.1} parent=5 // pred_region
        // Predicated region
        $region41: #{mlp_head_bnm.1} parent=39 // pred_check
          %p257 = pneg %p40
        $region42: #{mlp_head_bnm.1} parent=39 // pred_check_branch
          %259 = sbr.rel (%p257) target = $region44
        $region43: #{mlp_head_bnm.1} parent=39 // pred_region
          %s260 = sand.u32 %s30, 1
          %s261 = scalar_lea.sflag [#allocation3], %s260
          %s262 = sand.u32 %s30, 1
          %s263 = smul.addr %s262, 256
          %s264 = scalar_lea.vmem [#allocation2], %s263
          %s265 = smul.u32 32, %s20
          %267 = vsyncadd %s261, 0
          %s268 = smul.addr %s265, 8
          %s269 = scalar_lea.hbm %s0, %s268
          %s270 = sshll.u32 %s269, 4
          %s271 = int_to_ptr.hbm [resolvable:$true] %s270
          %s272 = sshll.u32 %s264, 4
          %s273 = int_to_ptr.vmem [resolvable:$true] %s272
          %278 = dma.hbm_to_vmem [thread:$0]  %s271, 4096, %s273, %s261, 128, 128, 8
        $region44: #{mlp_head_bnm.1} parent=39 // pred_fallthru
          _
      $region40: #{mlp_head_bnm.1} parent=5 // pred_fallthru
        _
      %p279 = scmp.le.s32.totalorder 1, %s20
      %p280 = scmp.lt.s32.totalorder %s20, 3
      %p281 = pnand %p279, %p280
      %p282 = pneg %p281
      // Predicated region
      $region45: #{mlp_head_bnm.1} parent=5 // pred_check
        _
      $region46: #{mlp_head_bnm.1} parent=5 // pred_check_branch
        %284 = sbr.rel (%p281) target = $region48
      $region47: #{mlp_head_bnm.1} parent=5 // pred_region
        %s285 = ssub.s32 %s20, 1
        %s286 = sand.u32 %s33, 1
        %s287 = scalar_lea.sflag [#allocation3], %s286
        %s288 = sand.u32 %s33, 1
        %s289 = smul.addr %s288, 256
        %s290 = scalar_lea.vmem [#allocation2], %s289
        // Predicated region
        $region49: #{mlp_head_bnm.1} parent=47 // pred_check
          %p291 = pneg %p46
        $region50: #{mlp_head_bnm.1} parent=47 // pred_check_branch
          %293 = sbr.rel (%p291) target = $region52
        $region51: #{mlp_head_bnm.1} parent=47 // pred_region
          %295 = dma.done %s287, 4096
        $region52: #{mlp_head_bnm.1} parent=47 // pred_fallthru
          _
        // Predicated region
        $region53: #{mlp_head_bnm.1} parent=47 // pred_check
          %p296 = pneg %p67
        $region54: #{mlp_head_bnm.1} parent=47 // pred_check_branch
          %298 = sbr.rel (%p296) target = $region56
        $region55: #{mlp_head_bnm.1} parent=47 // pred_region
          %300 = dma.done [#allocation6], 4096
        $region56: #{mlp_head_bnm.1} parent=47 // pred_fallthru
          _
        // Predicated region
        $region57: #{mlp_head_bnm.1} parent=47 // pred_check
          %p301 = pneg %p151
        $region58: #{mlp_head_bnm.1} parent=47 // pred_check_branch
          %303 = sbr.rel (%p301) target = $region60
        $region59: #{mlp_head_bnm.1} parent=47 // pred_region
          %305 = dma.done [#allocation6], 4096
        $region60: #{mlp_head_bnm.1} parent=47 // pred_fallthru
          _
        %s306 = sand.u32 %s33, 1
        %s307 = scalar_lea.sflag [#allocation3], %s306
        %s308 = sand.u32 %s33, 1
        %s309 = smul.addr %s308, 256
        %s310 = scalar_lea.vmem [#allocation2], %s309
        %p311 = pneg %p46
        %p312 = pneg %p43
        %p313 = pneg %p67
        %p314 = pneg %p64
        %p315 = pneg %p88
        %p316 = pneg %p85
        %p317 = pneg %p109
        %p318 = pneg %p106
        %p319 = pneg %p130
        %p320 = pneg %p127
        %p321 = pneg %p151
        %p322 = pneg %p148
        %p323 = pneg %p172
        %p324 = pneg %p169
        %p325 = pneg %p198
        %p326 = pneg %p195
        %s327 = sand.u32 %s185, 1
        %s328 = scalar_lea.sflag [#allocation4], %s327
        %s329 = sand.u32 %s185, 1
        %s330 = smul.addr %s329, 256
        %s331 = scalar_lea.vmem [#allocation8], %s330
        %s332 = smul.u32 32, %s25
        %s333 = smul.u32 32, %s25
        %v334 = vld [vmem:[%s2] sm:$0x3]
        %v335 = vld [vmem:[%s3] sm:$0x3]
        %v336 = vld [vmem:[%s4] sm:$0x3]
        %v337 = vld [vmem:[%s6] sm:$0x1]
        %v338 = vld [vmem:[%s290] sm:$0xff]
        %v339 = vld [vmem:[%s290 + $0x8] sm:$0xff]
        %v340 = vld [vmem:[%s290 + $0x10] sm:$0xff]
        %v341 = vld [vmem:[%s290 + $0x18] sm:$0xff]
        %v342 = vld [vmem:[%s290 + $0x20] sm:$0xff]
        %v343 = vld [vmem:[%s290 + $0x28] sm:$0xff]
        %v344 = vld [vmem:[%s290 + $0x30] sm:$0xff]
        %v345 = vld [vmem:[%s290 + $0x38] sm:$0xff]
        %v346 = vld [vmem:[%s290 + $0x40] sm:$0xff]
        %v347 = vld [vmem:[%s290 + $0x48] sm:$0xff]
        %v348 = vld [vmem:[%s290 + $0x50] sm:$0xff]
        %v349 = vld [vmem:[%s290 + $0x58] sm:$0xff]
        %v350 = vld [vmem:[%s290 + $0x60] sm:$0xff]
        %v351 = vld [vmem:[%s290 + $0x68] sm:$0xff]
        %v352 = vld [vmem:[%s290 + $0x70] sm:$0xff]
        %v353 = vld [vmem:[%s290 + $0x78] sm:$0xff]
        %v354 = vld [vmem:[#allocation5] sm:$0xff]
        %v355 = vld [vmem:[#allocation5 + $0x8] sm:$0xff]
        %v356 = vld [vmem:[#allocation5 + $0x10] sm:$0xff]
        %v357 = vld [vmem:[#allocation5 + $0x18] sm:$0xff]
        %v358 = vld [vmem:[#allocation5 + $0x20] sm:$0xff]
        %v359 = vld [vmem:[#allocation5 + $0x28] sm:$0xff]
        %v360 = vld [vmem:[#allocation5 + $0x30] sm:$0xff]
        %v361 = vld [vmem:[#allocation5 + $0x38] sm:$0xff]
        %v362 = vld [vmem:[#allocation5 + $0x40] sm:$0xff]
        %v363 = vld [vmem:[#allocation5 + $0x48] sm:$0xff]
        %v364 = vld [vmem:[#allocation5 + $0x50] sm:$0xff]
        %v365 = vld [vmem:[#allocation5 + $0x58] sm:$0xff]
        %v366 = vld [vmem:[#allocation5 + $0x60] sm:$0xff]
        %v367 = vld [vmem:[#allocation5 + $0x68] sm:$0xff]
        %v368 = vld [vmem:[#allocation5 + $0x70] sm:$0xff]
        %v369 = vld [vmem:[#allocation5 + $0x78] sm:$0xff]
        %v370 = vld [vmem:[#allocation5 + $0x80] sm:$0xff]
        %v371 = vld [vmem:[#allocation5 + $0x88] sm:$0xff]
        %v372 = vld [vmem:[#allocation5 + $0x90] sm:$0xff]
        %v373 = vld [vmem:[#allocation5 + $0x98] sm:$0xff]
        %v374 = vld [vmem:[#allocation5 + $0xa0] sm:$0xff]
        %v375 = vld [vmem:[#allocation5 + $0xa8] sm:$0xff]
        %v376 = vld [vmem:[#allocation5 + $0xb0] sm:$0xff]
        %v377 = vld [vmem:[#allocation5 + $0xb8] sm:$0xff]
        %v378 = vld [vmem:[#allocation5 + $0xc0] sm:$0xff]
        %v379 = vld [vmem:[#allocation5 + $0xc8] sm:$0xff]
        %v380 = vld [vmem:[#allocation5 + $0xd0] sm:$0xff]
        %v381 = vld [vmem:[#allocation5 + $0xd8] sm:$0xff]
        %v382 = vld [vmem:[#allocation5 + $0xe0] sm:$0xff]
        %v383 = vld [vmem:[#allocation5 + $0xe8] sm:$0xff]
        %v384 = vld [vmem:[#allocation5 + $0xf0] sm:$0xff]
        %v385 = vld [vmem:[#allocation5 + $0xf8] sm:$0xff]
        %v387 = vperm.slane %v334, 0
        %v388 = vperm.slane %v334, 1
        %391 = vmatpush.msra.mxu0 %v384
        %392 = vmatpush.msra.mxu0 %v382
        %393 = vmatpush.msra.mxu0 %v380
        %394 = vmatpush.msra.mxu0 %v378
        %395 = vmatpush.msra.mxu0 %v376
        %396 = vmatpush.msra.mxu0 %v374
        %397 = vmatpush.msra.mxu0 %v372
        %398 = vmatpush.msra.mxu0 %v370
        %399 = vmatpush.msra.mxu0 %v368
        %400 = vmatpush.msra.mxu0 %v366
        %401 = vmatpush.msra.mxu0 %v364
        %402 = vmatpush.msra.mxu0 %v362
        %403 = vmatpush.msra.mxu0 %v360
        %404 = vmatpush.msra.mxu0 %v358
        %405 = vmatpush.msra.mxu0 %v356
        %406 = vmatpush.msra.mxu0 %v354
        %407 = vmatmul.f32.gmra.mxu0 %v338
        %v408 = vpop.f32.mrf.mxu0
        %v409 = vadd.f32 %v387, %v408
        %410 = vmatmul.f32.gmra.mxu0 %v339
        %v411 = vpop.f32.mrf.mxu0
        %v412 = vadd.f32 %v387, %v411
        %413 = vmatmul.f32.gmra.mxu0 %v340
        %v414 = vpop.f32.mrf.mxu0
        %v415 = vadd.f32 %v387, %v414
        %416 = vmatmul.f32.gmra.mxu0 %v341
        %v417 = vpop.f32.mrf.mxu0
        %v418 = vadd.f32 %v387, %v417
        %419 = vmatmul.f32.gmra.mxu0 %v342
        %v420 = vpop.f32.mrf.mxu0
        %v421 = vadd.f32 %v387, %v420
        %422 = vmatmul.f32.gmra.mxu0 %v343
        %v423 = vpop.f32.mrf.mxu0
        %v424 = vadd.f32 %v387, %v423
        %425 = vmatmul.f32.gmra.mxu0 %v344
        %v426 = vpop.f32.mrf.mxu0
        %v427 = vadd.f32 %v387, %v426
        %428 = vmatmul.f32.gmra.mxu0 %v345
        %v429 = vpop.f32.mrf.mxu0
        %v430 = vadd.f32 %v387, %v429
        %431 = vmatmul.f32.gmra.mxu0 %v346
        %v432 = vpop.f32.mrf.mxu0
        %v433 = vadd.f32 %v387, %v432
        %434 = vmatmul.f32.gmra.mxu0 %v347
        %v435 = vpop.f32.mrf.mxu0
        %v436 = vadd.f32 %v387, %v435
        %437 = vmatmul.f32.gmra.mxu0 %v348
        %v438 = vpop.f32.mrf.mxu0
        %v439 = vadd.f32 %v387, %v438
        %440 = vmatmul.f32.gmra.mxu0 %v349
        %v441 = vpop.f32.mrf.mxu0
        %v442 = vadd.f32 %v387, %v441
        %443 = vmatmul.f32.gmra.mxu0 %v350
        %v444 = vpop.f32.mrf.mxu0
        %v445 = vadd.f32 %v387, %v444
        %446 = vmatmul.f32.gmra.mxu0 %v351
        %v447 = vpop.f32.mrf.mxu0
        %v448 = vadd.f32 %v387, %v447
        %449 = vmatmul.f32.gmra.mxu0 %v352
        %v450 = vpop.f32.mrf.mxu0
        %v451 = vadd.f32 %v387, %v450
        %452 = vmatmul.f32.gmra.mxu0 %v353
        %v453 = vpop.f32.mrf.mxu0
        %v454 = vadd.f32 %v387, %v453
        %455 = vdwg.mxu0
        %456 = vmatpush.msra.mxu0 %v385
        %457 = vmatpush.msra.mxu0 %v383
        %458 = vmatpush.msra.mxu0 %v381
        %459 = vmatpush.msra.mxu0 %v379
        %460 = vmatpush.msra.mxu0 %v377
        %461 = vmatpush.msra.mxu0 %v375
        %462 = vmatpush.msra.mxu0 %v373
        %463 = vmatpush.msra.mxu0 %v371
        %464 = vmatpush.msra.mxu0 %v369
        %465 = vmatpush.msra.mxu0 %v367
        %466 = vmatpush.msra.mxu0 %v365
        %467 = vmatpush.msra.mxu0 %v363
        %468 = vmatpush.msra.mxu0 %v361
        %469 = vmatpush.msra.mxu0 %v359
        %470 = vmatpush.msra.mxu0 %v357
        %471 = vmatpush.msra.mxu0 %v355
        %472 = vmatmul.f32.gmra.mxu0 %v338
        %v473 = vpop.f32.mrf.mxu0
        %v474 = vadd.f32 %v388, %v473
        %475 = vmatmul.f32.gmra.mxu0 %v339
        %v476 = vpop.f32.mrf.mxu0
        %v477 = vadd.f32 %v388, %v476
        %478 = vmatmul.f32.gmra.mxu0 %v340
        %v479 = vpop.f32.mrf.mxu0
        %v480 = vadd.f32 %v388, %v479
        %481 = vmatmul.f32.gmra.mxu0 %v341
        %v482 = vpop.f32.mrf.mxu0
        %v483 = vadd.f32 %v388, %v482
        %484 = vmatmul.f32.gmra.mxu0 %v342
        %v485 = vpop.f32.mrf.mxu0
        %v486 = vadd.f32 %v388, %v485
        %487 = vmatmul.f32.gmra.mxu0 %v343
        %v488 = vpop.f32.mrf.mxu0
        %v489 = vadd.f32 %v388, %v488
        %490 = vmatmul.f32.gmra.mxu0 %v344
        %v491 = vpop.f32.mrf.mxu0
        %v492 = vadd.f32 %v388, %v491
        %493 = vmatmul.f32.gmra.mxu0 %v345
        %v494 = vpop.f32.mrf.mxu0
        %v495 = vadd.f32 %v388, %v494
        %496 = vmatmul.f32.gmra.mxu0 %v346
        %v497 = vpop.f32.mrf.mxu0
        %v498 = vadd.f32 %v388, %v497
        %499 = vmatmul.f32.gmra.mxu0 %v347
        %v500 = vpop.f32.mrf.mxu0
        %v501 = vadd.f32 %v388, %v500
        %502 = vmatmul.f32.gmra.mxu0 %v348
        %v503 = vpop.f32.mrf.mxu0
        %v504 = vadd.f32 %v388, %v503
        %505 = vmatmul.f32.gmra.mxu0 %v349
        %v506 = vpop.f32.mrf.mxu0
        %v507 = vadd.f32 %v388, %v506
        %508 = vmatmul.f32.gmra.mxu0 %v350
        %v509 = vpop.f32.mrf.mxu0
        %v510 = vadd.f32 %v388, %v509
        %511 = vmatmul.f32.gmra.mxu0 %v351
        %v512 = vpop.f32.mrf.mxu0
        %v513 = vadd.f32 %v388, %v512
        %514 = vmatmul.f32.gmra.mxu0 %v352
        %v515 = vpop.f32.mrf.mxu0
        %v516 = vadd.f32 %v388, %v515
        %517 = vmatmul.f32.gmra.mxu0 %v353
        %v518 = vpop.f32.mrf.mxu0
        %v519 = vadd.f32 %v388, %v518
        %520 = vdwg.mxu0
        %v521 = vadd.f32 %v409, %v474
        %522 = vadd.xlane.f32.xlu0 %v521
        %v523 = vpop.xlane.xlu0 %522
        %v524 = vadd.f32 %v412, %v477
        %525 = vadd.xlane.f32.xlu0 %v524
        %v526 = vpop.xlane.xlu0 %525
        %v527 = vadd.f32 %v415, %v480
        %528 = vadd.xlane.f32.xlu0 %v527
        %v529 = vpop.xlane.xlu0 %528
        %v530 = vadd.f32 %v418, %v483
        %531 = vadd.xlane.f32.xlu0 %v530
        %v532 = vpop.xlane.xlu0 %531
        %v533 = vadd.f32 %v421, %v486
        %534 = vadd.xlane.f32.xlu0 %v533
        %v535 = vpop.xlane.xlu0 %534
        %v536 = vadd.f32 %v424, %v489
        %537 = vadd.xlane.f32.xlu0 %v536
        %v538 = vpop.xlane.xlu0 %537
        %v539 = vadd.f32 %v427, %v492
        %540 = vadd.xlane.f32.xlu0 %v539
        %v541 = vpop.xlane.xlu0 %540
        %v542 = vadd.f32 %v430, %v495
        %543 = vadd.xlane.f32.xlu0 %v542
        %v544 = vpop.xlane.xlu0 %543
        %v545 = vadd.f32 %v433, %v498
        %546 = vadd.xlane.f32.xlu0 %v545
        %v547 = vpop.xlane.xlu0 %546
        %v548 = vadd.f32 %v436, %v501
        %549 = vadd.xlane.f32.xlu0 %v548
        %v550 = vpop.xlane.xlu0 %549
        %v551 = vadd.f32 %v439, %v504
        %552 = vadd.xlane.f32.xlu0 %v551
        %v553 = vpop.xlane.xlu0 %552
        %v554 = vadd.f32 %v442, %v507
        %555 = vadd.xlane.f32.xlu0 %v554
        %v556 = vpop.xlane.xlu0 %555
        %v557 = vadd.f32 %v445, %v510
        %558 = vadd.xlane.f32.xlu0 %v557
        %v559 = vpop.xlane.xlu0 %558
        %v560 = vadd.f32 %v448, %v513
        %561 = vadd.xlane.f32.xlu0 %v560
        %v562 = vpop.xlane.xlu0 %561
        %v563 = vadd.f32 %v451, %v516
        %564 = vadd.xlane.f32.xlu0 %v563
        %v565 = vpop.xlane.xlu0 %564
        %v566 = vadd.f32 %v454, %v519
        %567 = vadd.xlane.f32.xlu0 %v566
        %v568 = vpop.xlane.xlu0 %567
        %v569 = vmul.f32 %v409, %v409
        %v570 = vmul.f32 %v474, %v474
        %v571 = vmul.f32 %v412, %v412
        %v572 = vmul.f32 %v477, %v477
        %v573 = vmul.f32 %v415, %v415
        %v574 = vmul.f32 %v480, %v480
        %v575 = vmul.f32 %v418, %v418
        %v576 = vmul.f32 %v483, %v483
        %v577 = vmul.f32 %v421, %v421
        %v578 = vmul.f32 %v486, %v486
        %v579 = vmul.f32 %v424, %v424
        %v580 = vmul.f32 %v489, %v489
        %v581 = vmul.f32 %v427, %v427
        %v582 = vmul.f32 %v492, %v492
        %v583 = vmul.f32 %v430, %v430
        %v584 = vmul.f32 %v495, %v495
        %v585 = vmul.f32 %v433, %v433
        %v586 = vmul.f32 %v498, %v498
        %v587 = vmul.f32 %v436, %v436
        %v588 = vmul.f32 %v501, %v501
        %v589 = vmul.f32 %v439, %v439
        %v590 = vmul.f32 %v504, %v504
        %v591 = vmul.f32 %v442, %v442
        %v592 = vmul.f32 %v507, %v507
        %v593 = vmul.f32 %v445, %v445
        %v594 = vmul.f32 %v510, %v510
        %v595 = vmul.f32 %v448, %v448
        %v596 = vmul.f32 %v513, %v513
        %v597 = vmul.f32 %v451, %v451
        %v598 = vmul.f32 %v516, %v516
        %v599 = vmul.f32 %v454, %v454
        %v600 = vmul.f32 %v519, %v519
        %v601 = vadd.f32 %v569, %v570
        %602 = vadd.xlane.f32.xlu0 %v601
        %v603 = vpop.xlane.xlu0 %602
        %v604 = vadd.f32 %v571, %v572
        %605 = vadd.xlane.f32.xlu0 %v604
        %v606 = vpop.xlane.xlu0 %605
        %v607 = vadd.f32 %v573, %v574
        %608 = vadd.xlane.f32.xlu0 %v607
        %v609 = vpop.xlane.xlu0 %608
        %v610 = vadd.f32 %v575, %v576
        %611 = vadd.xlane.f32.xlu0 %v610
        %v612 = vpop.xlane.xlu0 %611
        %v613 = vadd.f32 %v577, %v578
        %614 = vadd.xlane.f32.xlu0 %v613
        %v615 = vpop.xlane.xlu0 %614
        %v616 = vadd.f32 %v579, %v580
        %617 = vadd.xlane.f32.xlu0 %v616
        %v618 = vpop.xlane.xlu0 %617
        %v619 = vadd.f32 %v581, %v582
        %620 = vadd.xlane.f32.xlu0 %v619
        %v621 = vpop.xlane.xlu0 %620
        %v622 = vadd.f32 %v583, %v584
        %623 = vadd.xlane.f32.xlu0 %v622
        %v624 = vpop.xlane.xlu0 %623
        %v625 = vadd.f32 %v585, %v586
        %626 = vadd.xlane.f32.xlu0 %v625
        %v627 = vpop.xlane.xlu0 %626
        %v628 = vadd.f32 %v587, %v588
        %629 = vadd.xlane.f32.xlu0 %v628
        %v630 = vpop.xlane.xlu0 %629
        %v631 = vadd.f32 %v589, %v590
        %632 = vadd.xlane.f32.xlu0 %v631
        %v633 = vpop.xlane.xlu0 %632
        %v634 = vadd.f32 %v591, %v592
        %635 = vadd.xlane.f32.xlu0 %v634
        %v636 = vpop.xlane.xlu0 %635
        %v637 = vadd.f32 %v593, %v594
        %638 = vadd.xlane.f32.xlu0 %v637
        %v639 = vpop.xlane.xlu0 %638
        %v640 = vadd.f32 %v595, %v596
        %641 = vadd.xlane.f32.xlu0 %v640
        %v642 = vpop.xlane.xlu0 %641
        %v643 = vadd.f32 %v597, %v598
        %644 = vadd.xlane.f32.xlu0 %v643
        %v645 = vpop.xlane.xlu0 %644
        %v646 = vadd.f32 %v599, %v600
        %647 = vadd.xlane.f32.xlu0 %v646
        %v648 = vpop.xlane.xlu0 %647
        %v649 = vmul.f32 %v523, 0.00390625
        %v650 = vmul.f32 %v526, 0.00390625
        %v651 = vmul.f32 %v529, 0.00390625
        %v652 = vmul.f32 %v532, 0.00390625
        %v653 = vmul.f32 %v535, 0.00390625
        %v654 = vmul.f32 %v538, 0.00390625
        %v655 = vmul.f32 %v541, 0.00390625
        %v656 = vmul.f32 %v544, 0.00390625
        %v657 = vmul.f32 %v547, 0.00390625
        %v658 = vmul.f32 %v550, 0.00390625
        %v659 = vmul.f32 %v553, 0.00390625
        %v660 = vmul.f32 %v556, 0.00390625
        %v661 = vmul.f32 %v559, 0.00390625
        %v662 = vmul.f32 %v562, 0.00390625
        %v663 = vmul.f32 %v565, 0.00390625
        %v664 = vmul.f32 %v568, 0.00390625
        %v665 = vmul.f32 %v603, 0.00390625
        %v666 = vmul.f32 %v606, 0.00390625
        %v667 = vmul.f32 %v609, 0.00390625
        %v668 = vmul.f32 %v612, 0.00390625
        %v669 = vmul.f32 %v615, 0.00390625
        %v670 = vmul.f32 %v618, 0.00390625
        %v671 = vmul.f32 %v621, 0.00390625
        %v672 = vmul.f32 %v624, 0.00390625
        %v673 = vmul.f32 %v627, 0.00390625
        %v674 = vmul.f32 %v630, 0.00390625
        %v675 = vmul.f32 %v633, 0.00390625
        %v676 = vmul.f32 %v636, 0.00390625
        %v677 = vmul.f32 %v639, 0.00390625
        %v678 = vmul.f32 %v642, 0.00390625
        %v679 = vmul.f32 %v645, 0.00390625
        %v680 = vmul.f32 %v648, 0.00390625
        %v681 = vmul.f32 %v649, %v649
        %v682 = vmul.f32 %v650, %v650
        %v683 = vmul.f32 %v651, %v651
        %v684 = vmul.f32 %v652, %v652
        %v685 = vmul.f32 %v653, %v653
        %v686 = vmul.f32 %v654, %v654
        %v687 = vmul.f32 %v655, %v655
        %v688 = vmul.f32 %v656, %v656
        %v689 = vmul.f32 %v657, %v657
        %v690 = vmul.f32 %v658, %v658
        %v691 = vmul.f32 %v659, %v659
        %v692 = vmul.f32 %v660, %v660
        %v693 = vmul.f32 %v661, %v661
        %v694 = vmul.f32 %v662, %v662
        %v695 = vmul.f32 %v663, %v663
        %v696 = vmul.f32 %v664, %v664
        %v697 = vsub.f32 %v665, %v681
        %v698 = vsub.f32 %v666, %v682
        %v699 = vsub.f32 %v667, %v683
        %v700 = vsub.f32 %v668, %v684
        %v701 = vsub.f32 %v669, %v685
        %v702 = vsub.f32 %v670, %v686
        %v703 = vsub.f32 %v671, %v687
        %v704 = vsub.f32 %v672, %v688
        %v705 = vsub.f32 %v673, %v689
        %v706 = vsub.f32 %v674, %v690
        %v707 = vsub.f32 %v675, %v691
        %v708 = vsub.f32 %v676, %v692
        %v709 = vsub.f32 %v677, %v693
        %v710 = vsub.f32 %v678, %v694
        %v711 = vsub.f32 %v679, %v695
        %v712 = vsub.f32 %v680, %v696
        %v713 = vmax.f32 %v697, 0.0
        %v714 = vmax.f32 %v698, 0.0
        %v715 = vmax.f32 %v699, 0.0
        %v716 = vmax.f32 %v700, 0.0
        %v717 = vmax.f32 %v701, 0.0
        %v718 = vmax.f32 %v702, 0.0
        %v719 = vmax.f32 %v703, 0.0
        %v720 = vmax.f32 %v704, 0.0
        %v721 = vmax.f32 %v705, 0.0
        %v722 = vmax.f32 %v706, 0.0
        %v723 = vmax.f32 %v707, 0.0
        %v724 = vmax.f32 %v708, 0.0
        %v725 = vmax.f32 %v709, 0.0
        %v726 = vmax.f32 %v710, 0.0
        %v727 = vmax.f32 %v711, 0.0
        %v728 = vmax.f32 %v712, 0.0
        %v729 = vsub.f32 %v409, %v649
        %v730 = vsub.f32 %v474, %v649
        %v731 = vsub.f32 %v412, %v650
        %v732 = vsub.f32 %v477, %v650
        %v733 = vsub.f32 %v415, %v651
        %v734 = vsub.f32 %v480, %v651
        %v735 = vsub.f32 %v418, %v652
        %v736 = vsub.f32 %v483, %v652
        %v737 = vsub.f32 %v421, %v653
        %v738 = vsub.f32 %v486, %v653
        %v739 = vsub.f32 %v424, %v654
        %v740 = vsub.f32 %v489, %v654
        %v741 = vsub.f32 %v427, %v655
        %v742 = vsub.f32 %v492, %v655
        %v743 = vsub.f32 %v430, %v656
        %v744 = vsub.f32 %v495, %v656
        %v745 = vsub.f32 %v433, %v657
        %v746 = vsub.f32 %v498, %v657
        %v747 = vsub.f32 %v436, %v658
        %v748 = vsub.f32 %v501, %v658
        %v749 = vsub.f32 %v439, %v659
        %v750 = vsub.f32 %v504, %v659
        %v751 = vsub.f32 %v442, %v660
        %v752 = vsub.f32 %v507, %v660
        %v753 = vsub.f32 %v445, %v661
        %v754 = vsub.f32 %v510, %v661
        %v755 = vsub.f32 %v448, %v662
        %v756 = vsub.f32 %v513, %v662
        %v757 = vsub.f32 %v451, %v663
        %v758 = vsub.f32 %v516, %v663
        %v759 = vsub.f32 %v454, %v664
        %v760 = vsub.f32 %v519, %v664
        %v761 = vadd.f32 %v713, 1e-05
        %v762 = vadd.f32 %v714, 1e-05
        %v763 = vadd.f32 %v715, 1e-05
        %v764 = vadd.f32 %v716, 1e-05
        %v765 = vadd.f32 %v717, 1e-05
        %v766 = vadd.f32 %v718, 1e-05
        %v767 = vadd.f32 %v719, 1e-05
        %v768 = vadd.f32 %v720, 1e-05
        %v769 = vadd.f32 %v721, 1e-05
        %v770 = vadd.f32 %v722, 1e-05
        %v771 = vadd.f32 %v723, 1e-05
        %v772 = vadd.f32 %v724, 1e-05
        %v773 = vadd.f32 %v725, 1e-05
        %v774 = vadd.f32 %v726, 1e-05
        %v775 = vadd.f32 %v727, 1e-05
        %v776 = vadd.f32 %v728, 1e-05
        %v777 = vrsqrt.pop %v761
        %v778 = vmul.f32 %v777, %v761
        %v779 = vmul.f32 %v778, %v777
        %v780 = vmul.f32 0.5, %v779
        %v781 = vsub.f32 1.5, %v780
        %v782 = vmul.f32 %v777, %v781
        %vm783 = vweird.f32 %v761
        %vm784 = vweird.f32 %v777
        %vm785 = vmor %vm783, %vm784
        %v786 = vsel %vm785, %v777, %v782
        %v787 = vrsqrt.pop %v762
        %v788 = vmul.f32 %v787, %v762
        %v789 = vmul.f32 %v788, %v787
        %v790 = vmul.f32 0.5, %v789
        %v791 = vsub.f32 1.5, %v790
        %v792 = vmul.f32 %v787, %v791
        %vm793 = vweird.f32 %v762
        %vm794 = vweird.f32 %v787
        %vm795 = vmor %vm793, %vm794
        %v796 = vsel %vm795, %v787, %v792
        %v797 = vrsqrt.pop %v763
        %v798 = vmul.f32 %v797, %v763
        %v799 = vmul.f32 %v798, %v797
        %v800 = vmul.f32 0.5, %v799
        %v801 = vsub.f32 1.5, %v800
        %v802 = vmul.f32 %v797, %v801
        %vm803 = vweird.f32 %v763
        %vm804 = vweird.f32 %v797
        %vm805 = vmor %vm803, %vm804
        %v806 = vsel %vm805, %v797, %v802
        %v807 = vrsqrt.pop %v764
        %v808 = vmul.f32 %v807, %v764
        %v809 = vmul.f32 %v808, %v807
        %v810 = vmul.f32 0.5, %v809
        %v811 = vsub.f32 1.5, %v810
        %v812 = vmul.f32 %v807, %v811
        %vm813 = vweird.f32 %v764
        %vm814 = vweird.f32 %v807
        %vm815 = vmor %vm813, %vm814
        %v816 = vsel %vm815, %v807, %v812
        %v817 = vrsqrt.pop %v765
        %v818 = vmul.f32 %v817, %v765
        %v819 = vmul.f32 %v818, %v817
        %v820 = vmul.f32 0.5, %v819
        %v821 = vsub.f32 1.5, %v820
        %v822 = vmul.f32 %v817, %v821
        %vm823 = vweird.f32 %v765
        %vm824 = vweird.f32 %v817
        %vm825 = vmor %vm823, %vm824
        %v826 = vsel %vm825, %v817, %v822
        %v827 = vrsqrt.pop %v766
        %v828 = vmul.f32 %v827, %v766
        %v829 = vmul.f32 %v828, %v827
        %v830 = vmul.f32 0.5, %v829
        %v831 = vsub.f32 1.5, %v830
        %v832 = vmul.f32 %v827, %v831
        %vm833 = vweird.f32 %v766
        %vm834 = vweird.f32 %v827
        %vm835 = vmor %vm833, %vm834
        %v836 = vsel %vm835, %v827, %v832
        %v837 = vrsqrt.pop %v767
        %v838 = vmul.f32 %v837, %v767
        %v839 = vmul.f32 %v838, %v837
        %v840 = vmul.f32 0.5, %v839
        %v841 = vsub.f32 1.5, %v840
        %v842 = vmul.f32 %v837, %v841
        %vm843 = vweird.f32 %v767
        %vm844 = vweird.f32 %v837
        %vm845 = vmor %vm843, %vm844
        %v846 = vsel %vm845, %v837, %v842
        %v847 = vrsqrt.pop %v768
        %v848 = vmul.f32 %v847, %v768
        %v849 = vmul.f32 %v848, %v847
        %v850 = vmul.f32 0.5, %v849
        %v851 = vsub.f32 1.5, %v850
        %v852 = vmul.f32 %v847, %v851
        %vm853 = vweird.f32 %v768
        %vm854 = vweird.f32 %v847
        %vm855 = vmor %vm853, %vm854
        %v856 = vsel %vm855, %v847, %v852
        %v857 = vrsqrt.pop %v769
        %v858 = vmul.f32 %v857, %v769
        %v859 = vmul.f32 %v858, %v857
        %v860 = vmul.f32 0.5, %v859
        %v861 = vsub.f32 1.5, %v860
        %v862 = vmul.f32 %v857, %v861
        %vm863 = vweird.f32 %v769
        %vm864 = vweird.f32 %v857
        %vm865 = vmor %vm863, %vm864
        %v866 = vsel %vm865, %v857, %v862
        %v867 = vrsqrt.pop %v770
        %v868 = vmul.f32 %v867, %v770
        %v869 = vmul.f32 %v868, %v867
        %v870 = vmul.f32 0.5, %v869
        %v871 = vsub.f32 1.5, %v870
        %v872 = vmul.f32 %v867, %v871
        %vm873 = vweird.f32 %v770
        %vm874 = vweird.f32 %v867
        %vm875 = vmor %vm873, %vm874
        %v876 = vsel %vm875, %v867, %v872
        %v877 = vrsqrt.pop %v771
        %v878 = vmul.f32 %v877, %v771
        %v879 = vmul.f32 %v878, %v877
        %v880 = vmul.f32 0.5, %v879
        %v881 = vsub.f32 1.5, %v880
        %v882 = vmul.f32 %v877, %v881
        %vm883 = vweird.f32 %v771
        %vm884 = vweird.f32 %v877
        %vm885 = vmor %vm883, %vm884
        %v886 = vsel %vm885, %v877, %v882
        %v887 = vrsqrt.pop %v772
        %v888 = vmul.f32 %v887, %v772
        %v889 = vmul.f32 %v888, %v887
        %v890 = vmul.f32 0.5, %v889
        %v891 = vsub.f32 1.5, %v890
        %v892 = vmul.f32 %v887, %v891
        %vm893 = vweird.f32 %v772
        %vm894 = vweird.f32 %v887
        %vm895 = vmor %vm893, %vm894
        %v896 = vsel %vm895, %v887, %v892
        %v897 = vrsqrt.pop %v773
        %v898 = vmul.f32 %v897, %v773
        %v899 = vmul.f32 %v898, %v897
        %v900 = vmul.f32 0.5, %v899
        %v901 = vsub.f32 1.5, %v900
        %v902 = vmul.f32 %v897, %v901
        %vm903 = vweird.f32 %v773
        %vm904 = vweird.f32 %v897
        %vm905 = vmor %vm903, %vm904
        %v906 = vsel %vm905, %v897, %v902
        %v907 = vrsqrt.pop %v774
        %v908 = vmul.f32 %v907, %v774
        %v909 = vmul.f32 %v908, %v907
        %v910 = vmul.f32 0.5, %v909
        %v911 = vsub.f32 1.5, %v910
        %v912 = vmul.f32 %v907, %v911
        %vm913 = vweird.f32 %v774
        %vm914 = vweird.f32 %v907
        %vm915 = vmor %vm913, %vm914
        %v916 = vsel %vm915, %v907, %v912
        %v917 = vrsqrt.pop %v775
        %v918 = vmul.f32 %v917, %v775
        %v919 = vmul.f32 %v918, %v917
        %v920 = vmul.f32 0.5, %v919
        %v921 = vsub.f32 1.5, %v920
        %v922 = vmul.f32 %v917, %v921
        %vm923 = vweird.f32 %v775
        %vm924 = vweird.f32 %v917
        %vm925 = vmor %vm923, %vm924
        %v926 = vsel %vm925, %v917, %v922
        %v927 = vrsqrt.pop %v776
        %v928 = vmul.f32 %v927, %v776
        %v929 = vmul.f32 %v928, %v927
        %v930 = vmul.f32 0.5, %v929
        %v931 = vsub.f32 1.5, %v930
        %v932 = vmul.f32 %v927, %v931
        %vm933 = vweird.f32 %v776
        %vm934 = vweird.f32 %v927
        %vm935 = vmor %vm933, %vm934
        %v936 = vsel %vm935, %v927, %v932
        %v937 = vmul.f32 %v729, %v786
        %v938 = vmul.f32 %v730, %v786
        %v939 = vmul.f32 %v731, %v796
        %v940 = vmul.f32 %v732, %v796
        %v941 = vmul.f32 %v733, %v806
        %v942 = vmul.f32 %v734, %v806
        %v943 = vmul.f32 %v735, %v816
        %v944 = vmul.f32 %v736, %v816
        %v945 = vmul.f32 %v737, %v826
        %v946 = vmul.f32 %v738, %v826
        %v947 = vmul.f32 %v739, %v836
        %v948 = vmul.f32 %v740, %v836
        %v949 = vmul.f32 %v741, %v846
        %v950 = vmul.f32 %v742, %v846
        %v951 = vmul.f32 %v743, %v856
        %v952 = vmul.f32 %v744, %v856
        %v953 = vmul.f32 %v745, %v866
        %v954 = vmul.f32 %v746, %v866
        %v955 = vmul.f32 %v747, %v876
        %v956 = vmul.f32 %v748, %v876
        %v957 = vmul.f32 %v749, %v886
        %v958 = vmul.f32 %v750, %v886
        %v959 = vmul.f32 %v751, %v896
        %v960 = vmul.f32 %v752, %v896
        %v961 = vmul.f32 %v753, %v906
        %v962 = vmul.f32 %v754, %v906
        %v963 = vmul.f32 %v755, %v916
        %v964 = vmul.f32 %v756, %v916
        %v965 = vmul.f32 %v757, %v926
        %v966 = vmul.f32 %v758, %v926
        %v967 = vmul.f32 %v759, %v936
        %v968 = vmul.f32 %v760, %v936
        %v970 = vperm.slane %v335, 0
        %v971 = vperm.slane %v335, 1
        %v974 = vmul.f32 %v937, %v970
        %v975 = vmul.f32 %v938, %v971
        %v976 = vmul.f32 %v939, %v970
        %v977 = vmul.f32 %v940, %v971
        %v978 = vmul.f32 %v941, %v970
        %v979 = vmul.f32 %v942, %v971
        %v980 = vmul.f32 %v943, %v970
        %v981 = vmul.f32 %v944, %v971
        %v982 = vmul.f32 %v945, %v970
        %v983 = vmul.f32 %v946, %v971
        %v984 = vmul.f32 %v947, %v970
        %v985 = vmul.f32 %v948, %v971
        %v986 = vmul.f32 %v949, %v970
        %v987 = vmul.f32 %v950, %v971
        %v988 = vmul.f32 %v951, %v970
        %v989 = vmul.f32 %v952, %v971
        %v990 = vmul.f32 %v953, %v970
        %v991 = vmul.f32 %v954, %v971
        %v992 = vmul.f32 %v955, %v970
        %v993 = vmul.f32 %v956, %v971
        %v994 = vmul.f32 %v957, %v970
        %v995 = vmul.f32 %v958, %v971
        %v996 = vmul.f32 %v959, %v970
        %v997 = vmul.f32 %v960, %v971
        %v998 = vmul.f32 %v961, %v970
        %v999 = vmul.f32 %v962, %v971
        %v1000 = vmul.f32 %v963, %v970
        %v1001 = vmul.f32 %v964, %v971
        %v1002 = vmul.f32 %v965, %v970
        %v1003 = vmul.f32 %v966, %v971
        %v1004 = vmul.f32 %v967, %v970
        %v1005 = vmul.f32 %v968, %v971
        %v1007 = vperm.slane %v336, 0
        %v1008 = vperm.slane %v336, 1
        %v1011 = vadd.f32 %v974, %v1007
        %v1012 = vadd.f32 %v975, %v1008
        %v1013 = vadd.f32 %v976, %v1007
        %v1014 = vadd.f32 %v977, %v1008
        %v1015 = vadd.f32 %v978, %v1007
        %v1016 = vadd.f32 %v979, %v1008
        %v1017 = vadd.f32 %v980, %v1007
        %v1018 = vadd.f32 %v981, %v1008
        %v1019 = vadd.f32 %v982, %v1007
        %v1020 = vadd.f32 %v983, %v1008
        %v1021 = vadd.f32 %v984, %v1007
        %v1022 = vadd.f32 %v985, %v1008
        %v1023 = vadd.f32 %v986, %v1007
        %v1024 = vadd.f32 %v987, %v1008
        %v1025 = vadd.f32 %v988, %v1007
        %v1026 = vadd.f32 %v989, %v1008
        %v1027 = vadd.f32 %v990, %v1007
        %v1028 = vadd.f32 %v991, %v1008
        %v1029 = vadd.f32 %v992, %v1007
        %v1030 = vadd.f32 %v993, %v1008
        %v1031 = vadd.f32 %v994, %v1007
        %v1032 = vadd.f32 %v995, %v1008
        %v1033 = vadd.f32 %v996, %v1007
        %v1034 = vadd.f32 %v997, %v1008
        %v1035 = vadd.f32 %v998, %v1007
        %v1036 = vadd.f32 %v999, %v1008
        %v1037 = vadd.f32 %v1000, %v1007
        %v1038 = vadd.f32 %v1001, %v1008
        %v1039 = vadd.f32 %v1002, %v1007
        %v1040 = vadd.f32 %v1003, %v1008
        %v1041 = vadd.f32 %v1004, %v1007
        %v1042 = vadd.f32 %v1005, %v1008
        %v1043 = vmax.f32 %v1011, 0.0
        %v1044 = vmax.f32 %v1012, 0.0
        %v1045 = vmax.f32 %v1013, 0.0
        %v1046 = vmax.f32 %v1014, 0.0
        %v1047 = vmax.f32 %v1015, 0.0
        %v1048 = vmax.f32 %v1016, 0.0
        %v1049 = vmax.f32 %v1017, 0.0
        %v1050 = vmax.f32 %v1018, 0.0
        %v1051 = vmax.f32 %v1019, 0.0
        %v1052 = vmax.f32 %v1020, 0.0
        %v1053 = vmax.f32 %v1021, 0.0
        %v1054 = vmax.f32 %v1022, 0.0
        %v1055 = vmax.f32 %v1023, 0.0
        %v1056 = vmax.f32 %v1024, 0.0
        %v1057 = vmax.f32 %v1025, 0.0
        %v1058 = vmax.f32 %v1026, 0.0
        %v1059 = vmax.f32 %v1027, 0.0
        %v1060 = vmax.f32 %v1028, 0.0
        %v1061 = vmax.f32 %v1029, 0.0
        %v1062 = vmax.f32 %v1030, 0.0
        %v1063 = vmax.f32 %v1031, 0.0
        %v1064 = vmax.f32 %v1032, 0.0
        %v1065 = vmax.f32 %v1033, 0.0
        %v1066 = vmax.f32 %v1034, 0.0
        %v1067 = vmax.f32 %v1035, 0.0
        %v1068 = vmax.f32 %v1036, 0.0
        %v1069 = vmax.f32 %v1037, 0.0
        %v1070 = vmax.f32 %v1038, 0.0
        %v1071 = vmax.f32 %v1039, 0.0
        %v1072 = vmax.f32 %v1040, 0.0
        %v1073 = vmax.f32 %v1041, 0.0
        %v1074 = vmax.f32 %v1042, 0.0
        %v1075 = vld [vmem:[#allocation7] sm:$0xff]
        %v1076 = vld [vmem:[#allocation7 + $0x8] sm:$0xff]
        %v1077 = vld [vmem:[#allocation7 + $0x10] sm:$0xff]
        %v1078 = vld [vmem:[#allocation7 + $0x18] sm:$0xff]
        %v1079 = vld [vmem:[#allocation7 + $0x20] sm:$0xff]
        %v1080 = vld [vmem:[#allocation7 + $0x28] sm:$0xff]
        %v1081 = vld [vmem:[#allocation7 + $0x30] sm:$0xff]
        %v1082 = vld [vmem:[#allocation7 + $0x38] sm:$0xff]
        %v1083 = vld [vmem:[#allocation7 + $0x40] sm:$0xff]
        %v1084 = vld [vmem:[#allocation7 + $0x48] sm:$0xff]
        %v1085 = vld [vmem:[#allocation7 + $0x50] sm:$0xff]
        %v1086 = vld [vmem:[#allocation7 + $0x58] sm:$0xff]
        %v1087 = vld [vmem:[#allocation7 + $0x60] sm:$0xff]
        %v1088 = vld [vmem:[#allocation7 + $0x68] sm:$0xff]
        %v1089 = vld [vmem:[#allocation7 + $0x70] sm:$0xff]
        %v1090 = vld [vmem:[#allocation7 + $0x78] sm:$0xff]
        %v1091 = vld [vmem:[#allocation7 + $0x80] sm:$0xff]
        %v1092 = vld [vmem:[#allocation7 + $0x88] sm:$0xff]
        %v1093 = vld [vmem:[#allocation7 + $0x90] sm:$0xff]
        %v1094 = vld [vmem:[#allocation7 + $0x98] sm:$0xff]
        %v1095 = vld [vmem:[#allocation7 + $0xa0] sm:$0xff]
        %v1096 = vld [vmem:[#allocation7 + $0xa8] sm:$0xff]
        %v1097 = vld [vmem:[#allocation7 + $0xb0] sm:$0xff]
        %v1098 = vld [vmem:[#allocation7 + $0xb8] sm:$0xff]
        %v1099 = vld [vmem:[#allocation7 + $0xc0] sm:$0xff]
        %v1100 = vld [vmem:[#allocation7 + $0xc8] sm:$0xff]
        %v1101 = vld [vmem:[#allocation7 + $0xd0] sm:$0xff]
        %v1102 = vld [vmem:[#allocation7 + $0xd8] sm:$0xff]
        %v1103 = vld [vmem:[#allocation7 + $0xe0] sm:$0xff]
        %v1104 = vld [vmem:[#allocation7 + $0xe8] sm:$0xff]
        %v1105 = vld [vmem:[#allocation7 + $0xf0] sm:$0xff]
        %v1106 = vld [vmem:[#allocation7 + $0xf8] sm:$0xff]
        %v1108 = vperm.slane %v337, 0
        %1110 = vmatpush.msra.mxu0 %v1090
        %1111 = vmatpush.msra.mxu0 %v1089
        %1112 = vmatpush.msra.mxu0 %v1088
        %1113 = vmatpush.msra.mxu0 %v1087
        %1114 = vmatpush.msra.mxu0 %v1086
        %1115 = vmatpush.msra.mxu0 %v1085
        %1116 = vmatpush.msra.mxu0 %v1084
        %1117 = vmatpush.msra.mxu0 %v1083
        %1118 = vmatpush.msra.mxu0 %v1082
        %1119 = vmatpush.msra.mxu0 %v1081
        %1120 = vmatpush.msra.mxu0 %v1080
        %1121 = vmatpush.msra.mxu0 %v1079
        %1122 = vmatpush.msra.mxu0 %v1078
        %1123 = vmatpush.msra.mxu0 %v1077
        %1124 = vmatpush.msra.mxu0 %v1076
        %1125 = vmatpush.msra.mxu0 %v1075
        %1126 = vmatmul.f32.gmra.mxu0 %v1043
        %v1127 = vpop.f32.mrf.mxu0
        %v1128 = vadd.f32 %v1108, %v1127
        %1129 = vmatmul.f32.gmra.mxu0 %v1045
        %v1130 = vpop.f32.mrf.mxu0
        %v1131 = vadd.f32 %v1108, %v1130
        %1132 = vmatmul.f32.gmra.mxu0 %v1047
        %v1133 = vpop.f32.mrf.mxu0
        %v1134 = vadd.f32 %v1108, %v1133
        %1135 = vmatmul.f32.gmra.mxu0 %v1049
        %v1136 = vpop.f32.mrf.mxu0
        %v1137 = vadd.f32 %v1108, %v1136
        %1138 = vmatmul.f32.gmra.mxu0 %v1051
        %v1139 = vpop.f32.mrf.mxu0
        %v1140 = vadd.f32 %v1108, %v1139
        %1141 = vmatmul.f32.gmra.mxu0 %v1053
        %v1142 = vpop.f32.mrf.mxu0
        %v1143 = vadd.f32 %v1108, %v1142
        %1144 = vmatmul.f32.gmra.mxu0 %v1055
        %v1145 = vpop.f32.mrf.mxu0
        %v1146 = vadd.f32 %v1108, %v1145
        %1147 = vmatmul.f32.gmra.mxu0 %v1057
        %v1148 = vpop.f32.mrf.mxu0
        %v1149 = vadd.f32 %v1108, %v1148
        %1150 = vmatmul.f32.gmra.mxu0 %v1059
        %v1151 = vpop.f32.mrf.mxu0
        %v1152 = vadd.f32 %v1108, %v1151
        %1153 = vmatmul.f32.gmra.mxu0 %v1061
        %v1154 = vpop.f32.mrf.mxu0
        %v1155 = vadd.f32 %v1108, %v1154
        %1156 = vmatmul.f32.gmra.mxu0 %v1063
        %v1157 = vpop.f32.mrf.mxu0
        %v1158 = vadd.f32 %v1108, %v1157
        %1159 = vmatmul.f32.gmra.mxu0 %v1065
        %v1160 = vpop.f32.mrf.mxu0
        %v1161 = vadd.f32 %v1108, %v1160
        %1162 = vmatmul.f32.gmra.mxu0 %v1067
        %v1163 = vpop.f32.mrf.mxu0
        %v1164 = vadd.f32 %v1108, %v1163
        %1165 = vmatmul.f32.gmra.mxu0 %v1069
        %v1166 = vpop.f32.mrf.mxu0
        %v1167 = vadd.f32 %v1108, %v1166
        %1168 = vmatmul.f32.gmra.mxu0 %v1071
        %v1169 = vpop.f32.mrf.mxu0
        %v1170 = vadd.f32 %v1108, %v1169
        %1171 = vmatmul.f32.gmra.mxu0 %v1073
        %v1172 = vpop.f32.mrf.mxu0
        %v1173 = vadd.f32 %v1108, %v1172
        %1174 = vdwg.mxu0
        %1175 = vmatpush.msra.mxu0 %v1106
        %1176 = vmatpush.msra.mxu0 %v1105
        %1177 = vmatpush.msra.mxu0 %v1104
        %1178 = vmatpush.msra.mxu0 %v1103
        %1179 = vmatpush.msra.mxu0 %v1102
        %1180 = vmatpush.msra.mxu0 %v1101
        %1181 = vmatpush.msra.mxu0 %v1100
        %1182 = vmatpush.msra.mxu0 %v1099
        %1183 = vmatpush.msra.mxu0 %v1098
        %1184 = vmatpush.msra.mxu0 %v1097
        %1185 = vmatpush.msra.mxu0 %v1096
        %1186 = vmatpush.msra.mxu0 %v1095
        %1187 = vmatpush.msra.mxu0 %v1094
        %1188 = vmatpush.msra.mxu0 %v1093
        %1189 = vmatpush.msra.mxu0 %v1092
        %1190 = vmatpush.msra.mxu0 %v1091
        %1191 = vmatmul.f32.gmra.mxu0 %v1044
        %v1192 = vpop.f32.mrf.mxu0
        %v1193 = vadd.f32 %v1128, %v1192
        %1194 = vmatmul.f32.gmra.mxu0 %v1046
        %v1195 = vpop.f32.mrf.mxu0
        %v1196 = vadd.f32 %v1131, %v1195
        %1197 = vmatmul.f32.gmra.mxu0 %v1048
        %v1198 = vpop.f32.mrf.mxu0
        %v1199 = vadd.f32 %v1134, %v1198
        %1200 = vmatmul.f32.gmra.mxu0 %v1050
        %v1201 = vpop.f32.mrf.mxu0
        %v1202 = vadd.f32 %v1137, %v1201
        %1203 = vmatmul.f32.gmra.mxu0 %v1052
        %v1204 = vpop.f32.mrf.mxu0
        %v1205 = vadd.f32 %v1140, %v1204
        %1206 = vmatmul.f32.gmra.mxu0 %v1054
        %v1207 = vpop.f32.mrf.mxu0
        %v1208 = vadd.f32 %v1143, %v1207
        %1209 = vmatmul.f32.gmra.mxu0 %v1056
        %v1210 = vpop.f32.mrf.mxu0
        %v1211 = vadd.f32 %v1146, %v1210
        %1212 = vmatmul.f32.gmra.mxu0 %v1058
        %v1213 = vpop.f32.mrf.mxu0
        %v1214 = vadd.f32 %v1149, %v1213
        %1215 = vmatmul.f32.gmra.mxu0 %v1060
        %v1216 = vpop.f32.mrf.mxu0
        %v1217 = vadd.f32 %v1152, %v1216
        %1218 = vmatmul.f32.gmra.mxu0 %v1062
        %v1219 = vpop.f32.mrf.mxu0
        %v1220 = vadd.f32 %v1155, %v1219
        %1221 = vmatmul.f32.gmra.mxu0 %v1064
        %v1222 = vpop.f32.mrf.mxu0
        %v1223 = vadd.f32 %v1158, %v1222
        %1224 = vmatmul.f32.gmra.mxu0 %v1066
        %v1225 = vpop.f32.mrf.mxu0
        %v1226 = vadd.f32 %v1161, %v1225
        %1227 = vmatmul.f32.gmra.mxu0 %v1068
        %v1228 = vpop.f32.mrf.mxu0
        %v1229 = vadd.f32 %v1164, %v1228
        %1230 = vmatmul.f32.gmra.mxu0 %v1070
        %v1231 = vpop.f32.mrf.mxu0
        %v1232 = vadd.f32 %v1167, %v1231
        %1233 = vmatmul.f32.gmra.mxu0 %v1072
        %v1234 = vpop.f32.mrf.mxu0
        %v1235 = vadd.f32 %v1170, %v1234
        %1236 = vmatmul.f32.gmra.mxu0 %v1074
        %v1237 = vpop.f32.mrf.mxu0
        %v1238 = vadd.f32 %v1173, %v1237
        %1239 = vdwg.mxu0
        %1240 = vst [vmem:[%s331] sm:$0xff] %v1193
        %1241 = vst [vmem:[%s331 + $0x8] sm:$0xff] %v1196
        %1242 = vst [vmem:[%s331 + $0x10] sm:$0xff] %v1199
        %1243 = vst [vmem:[%s331 + $0x18] sm:$0xff] %v1202
        %1244 = vst [vmem:[%s331 + $0x20] sm:$0xff] %v1205
        %1245 = vst [vmem:[%s331 + $0x28] sm:$0xff] %v1208
        %1246 = vst [vmem:[%s331 + $0x30] sm:$0xff] %v1211
        %1247 = vst [vmem:[%s331 + $0x38] sm:$0xff] %v1214
        %1248 = vst [vmem:[%s331 + $0x40] sm:$0xff] %v1217
        %1249 = vst [vmem:[%s331 + $0x48] sm:$0xff] %v1220
        %1250 = vst [vmem:[%s331 + $0x50] sm:$0xff] %v1223
        %1251 = vst [vmem:[%s331 + $0x58] sm:$0xff] %v1226
        %1252 = vst [vmem:[%s331 + $0x60] sm:$0xff] %v1229
        %1253 = vst [vmem:[%s331 + $0x68] sm:$0xff] %v1232
        %1254 = vst [vmem:[%s331 + $0x70] sm:$0xff] %v1235
        %1255 = vst [vmem:[%s331 + $0x78] sm:$0xff] %v1238
        %s1256 = scalar_lea.vmem %s290, 128 [#allocation2]
        %v1257 = vld [vmem:[%s1256] sm:$0xff]
        %v1258 = vld [vmem:[%s1256 + $0x8] sm:$0xff]
        %v1259 = vld [vmem:[%s1256 + $0x10] sm:$0xff]
        %v1260 = vld [vmem:[%s1256 + $0x18] sm:$0xff]
        %v1261 = vld [vmem:[%s1256 + $0x20] sm:$0xff]
        %v1262 = vld [vmem:[%s1256 + $0x28] sm:$0xff]
        %v1263 = vld [vmem:[%s1256 + $0x30] sm:$0xff]
        %v1264 = vld [vmem:[%s1256 + $0x38] sm:$0xff]
        %v1265 = vld [vmem:[%s1256 + $0x40] sm:$0xff]
        %v1266 = vld [vmem:[%s1256 + $0x48] sm:$0xff]
        %v1267 = vld [vmem:[%s1256 + $0x50] sm:$0xff]
        %v1268 = vld [vmem:[%s1256 + $0x58] sm:$0xff]
        %v1269 = vld [vmem:[%s1256 + $0x60] sm:$0xff]
        %v1270 = vld [vmem:[%s1256 + $0x68] sm:$0xff]
        %v1271 = vld [vmem:[%s1256 + $0x70] sm:$0xff]
        %v1272 = vld [vmem:[%s1256 + $0x78] sm:$0xff]
        %v1273 = vld [vmem:[#allocation5] sm:$0xff]
        %v1274 = vld [vmem:[#allocation5 + $0x8] sm:$0xff]
        %v1275 = vld [vmem:[#allocation5 + $0x10] sm:$0xff]
        %v1276 = vld [vmem:[#allocation5 + $0x18] sm:$0xff]
        %v1277 = vld [vmem:[#allocation5 + $0x20] sm:$0xff]
        %v1278 = vld [vmem:[#allocation5 + $0x28] sm:$0xff]
        %v1279 = vld [vmem:[#allocation5 + $0x30] sm:$0xff]
        %v1280 = vld [vmem:[#allocation5 + $0x38] sm:$0xff]
        %v1281 = vld [vmem:[#allocation5 + $0x40] sm:$0xff]
        %v1282 = vld [vmem:[#allocation5 + $0x48] sm:$0xff]
        %v1283 = vld [vmem:[#allocation5 + $0x50] sm:$0xff]
        %v1284 = vld [vmem:[#allocation5 + $0x58] sm:$0xff]
        %v1285 = vld [vmem:[#allocation5 + $0x60] sm:$0xff]
        %v1286 = vld [vmem:[#allocation5 + $0x68] sm:$0xff]
        %v1287 = vld [vmem:[#allocation5 + $0x70] sm:$0xff]
        %v1288 = vld [vmem:[#allocation5 + $0x78] sm:$0xff]
        %v1289 = vld [vmem:[#allocation5 + $0x80] sm:$0xff]
        %v1290 = vld [vmem:[#allocation5 + $0x88] sm:$0xff]
        %v1291 = vld [vmem:[#allocation5 + $0x90] sm:$0xff]
        %v1292 = vld [vmem:[#allocation5 + $0x98] sm:$0xff]
        %v1293 = vld [vmem:[#allocation5 + $0xa0] sm:$0xff]
        %v1294 = vld [vmem:[#allocation5 + $0xa8] sm:$0xff]
        %v1295 = vld [vmem:[#allocation5 + $0xb0] sm:$0xff]
        %v1296 = vld [vmem:[#allocation5 + $0xb8] sm:$0xff]
        %v1297 = vld [vmem:[#allocation5 + $0xc0] sm:$0xff]
        %v1298 = vld [vmem:[#allocation5 + $0xc8] sm:$0xff]
        %v1299 = vld [vmem:[#allocation5 + $0xd0] sm:$0xff]
        %v1300 = vld [vmem:[#allocation5 + $0xd8] sm:$0xff]
        %v1301 = vld [vmem:[#allocation5 + $0xe0] sm:$0xff]
        %v1302 = vld [vmem:[#allocation5 + $0xe8] sm:$0xff]
        %v1303 = vld [vmem:[#allocation5 + $0xf0] sm:$0xff]
        %v1304 = vld [vmem:[#allocation5 + $0xf8] sm:$0xff]
        %1305 = vmatpush.msra.mxu0 %v1303
        %1306 = vmatpush.msra.mxu0 %v1301
        %1307 = vmatpush.msra.mxu0 %v1299
        %1308 = vmatpush.msra.mxu0 %v1297
        %1309 = vmatpush.msra.mxu0 %v1295
        %1310 = vmatpush.msra.mxu0 %v1293
        %1311 = vmatpush.msra.mxu0 %v1291
        %1312 = vmatpush.msra.mxu0 %v1289
        %1313 = vmatpush.msra.mxu0 %v1287
        %1314 = vmatpush.msra.mxu0 %v1285
        %1315 = vmatpush.msra.mxu0 %v1283
        %1316 = vmatpush.msra.mxu0 %v1281
        %1317 = vmatpush.msra.mxu0 %v1279
        %1318 = vmatpush.msra.mxu0 %v1277
        %1319 = vmatpush.msra.mxu0 %v1275
        %1320 = vmatpush.msra.mxu0 %v1273
        %1321 = vmatmul.f32.gmra.mxu0 %v1257
        %v1322 = vpop.f32.mrf.mxu0
        %v1323 = vadd.f32 %v387, %v1322
        %1324 = vmatmul.f32.gmra.mxu0 %v1258
        %v1325 = vpop.f32.mrf.mxu0
        %v1326 = vadd.f32 %v387, %v1325
        %1327 = vmatmul.f32.gmra.mxu0 %v1259
        %v1328 = vpop.f32.mrf.mxu0
        %v1329 = vadd.f32 %v387, %v1328
        %1330 = vmatmul.f32.gmra.mxu0 %v1260
        %v1331 = vpop.f32.mrf.mxu0
        %v1332 = vadd.f32 %v387, %v1331
        %1333 = vmatmul.f32.gmra.mxu0 %v1261
        %v1334 = vpop.f32.mrf.mxu0
        %v1335 = vadd.f32 %v387, %v1334
        %1336 = vmatmul.f32.gmra.mxu0 %v1262
        %v1337 = vpop.f32.mrf.mxu0
        %v1338 = vadd.f32 %v387, %v1337
        %1339 = vmatmul.f32.gmra.mxu0 %v1263
        %v1340 = vpop.f32.mrf.mxu0
        %v1341 = vadd.f32 %v387, %v1340
        %1342 = vmatmul.f32.gmra.mxu0 %v1264
        %v1343 = vpop.f32.mrf.mxu0
        %v1344 = vadd.f32 %v387, %v1343
        %1345 = vmatmul.f32.gmra.mxu0 %v1265
        %v1346 = vpop.f32.mrf.mxu0
        %v1347 = vadd.f32 %v387, %v1346
        %1348 = vmatmul.f32.gmra.mxu0 %v1266
        %v1349 = vpop.f32.mrf.mxu0
        %v1350 = vadd.f32 %v387, %v1349
        %1351 = vmatmul.f32.gmra.mxu0 %v1267
        %v1352 = vpop.f32.mrf.mxu0
        %v1353 = vadd.f32 %v387, %v1352
        %1354 = vmatmul.f32.gmra.mxu0 %v1268
        %v1355 = vpop.f32.mrf.mxu0
        %v1356 = vadd.f32 %v387, %v1355
        %1357 = vmatmul.f32.gmra.mxu0 %v1269
        %v1358 = vpop.f32.mrf.mxu0
        %v1359 = vadd.f32 %v387, %v1358
        %1360 = vmatmul.f32.gmra.mxu0 %v1270
        %v1361 = vpop.f32.mrf.mxu0
        %v1362 = vadd.f32 %v387, %v1361
        %1363 = vmatmul.f32.gmra.mxu0 %v1271
        %v1364 = vpop.f32.mrf.mxu0
        %v1365 = vadd.f32 %v387, %v1364
        %1366 = vmatmul.f32.gmra.mxu0 %v1272
        %v1367 = vpop.f32.mrf.mxu0
        %v1368 = vadd.f32 %v387, %v1367
        %1369 = vdwg.mxu0
        %1370 = vmatpush.msra.mxu0 %v1304
        %1371 = vmatpush.msra.mxu0 %v1302
        %1372 = vmatpush.msra.mxu0 %v1300
        %1373 = vmatpush.msra.mxu0 %v1298
        %1374 = vmatpush.msra.mxu0 %v1296
        %1375 = vmatpush.msra.mxu0 %v1294
        %1376 = vmatpush.msra.mxu0 %v1292
        %1377 = vmatpush.msra.mxu0 %v1290
        %1378 = vmatpush.msra.mxu0 %v1288
        %1379 = vmatpush.msra.mxu0 %v1286
        %1380 = vmatpush.msra.mxu0 %v1284
        %1381 = vmatpush.msra.mxu0 %v1282
        %1382 = vmatpush.msra.mxu0 %v1280
        %1383 = vmatpush.msra.mxu0 %v1278
        %1384 = vmatpush.msra.mxu0 %v1276
        %1385 = vmatpush.msra.mxu0 %v1274
        %1386 = vmatmul.f32.gmra.mxu0 %v1257
        %v1387 = vpop.f32.mrf.mxu0
        %v1388 = vadd.f32 %v388, %v1387
        %1389 = vmatmul.f32.gmra.mxu0 %v1258
        %v1390 = vpop.f32.mrf.mxu0
        %v1391 = vadd.f32 %v388, %v1390
        %1392 = vmatmul.f32.gmra.mxu0 %v1259
        %v1393 = vpop.f32.mrf.mxu0
        %v1394 = vadd.f32 %v388, %v1393
        %1395 = vmatmul.f32.gmra.mxu0 %v1260
        %v1396 = vpop.f32.mrf.mxu0
        %v1397 = vadd.f32 %v388, %v1396
        %1398 = vmatmul.f32.gmra.mxu0 %v1261
        %v1399 = vpop.f32.mrf.mxu0
        %v1400 = vadd.f32 %v388, %v1399
        %1401 = vmatmul.f32.gmra.mxu0 %v1262
        %v1402 = vpop.f32.mrf.mxu0
        %v1403 = vadd.f32 %v388, %v1402
        %1404 = vmatmul.f32.gmra.mxu0 %v1263
        %v1405 = vpop.f32.mrf.mxu0
        %v1406 = vadd.f32 %v388, %v1405
        %1407 = vmatmul.f32.gmra.mxu0 %v1264
        %v1408 = vpop.f32.mrf.mxu0
        %v1409 = vadd.f32 %v388, %v1408
        %1410 = vmatmul.f32.gmra.mxu0 %v1265
        %v1411 = vpop.f32.mrf.mxu0
        %v1412 = vadd.f32 %v388, %v1411
        %1413 = vmatmul.f32.gmra.mxu0 %v1266
        %v1414 = vpop.f32.mrf.mxu0
        %v1415 = vadd.f32 %v388, %v1414
        %1416 = vmatmul.f32.gmra.mxu0 %v1267
        %v1417 = vpop.f32.mrf.mxu0
        %v1418 = vadd.f32 %v388, %v1417
        %1419 = vmatmul.f32.gmra.mxu0 %v1268
        %v1420 = vpop.f32.mrf.mxu0
        %v1421 = vadd.f32 %v388, %v1420
        %1422 = vmatmul.f32.gmra.mxu0 %v1269
        %v1423 = vpop.f32.mrf.mxu0
        %v1424 = vadd.f32 %v388, %v1423
        %1425 = vmatmul.f32.gmra.mxu0 %v1270
        %v1426 = vpop.f32.mrf.mxu0
        %v1427 = vadd.f32 %v388, %v1426
        %1428 = vmatmul.f32.gmra.mxu0 %v1271
        %v1429 = vpop.f32.mrf.mxu0
        %v1430 = vadd.f32 %v388, %v1429
        %1431 = vmatmul.f32.gmra.mxu0 %v1272
        %v1432 = vpop.f32.mrf.mxu0
        %v1433 = vadd.f32 %v388, %v1432
        %1434 = vdwg.mxu0
        %v1435 = vadd.f32 %v1323, %v1388
        %1436 = vadd.xlane.f32.xlu0 %v1435
        %v1437 = vpop.xlane.xlu0 %1436
        %v1438 = vadd.f32 %v1326, %v1391
        %1439 = vadd.xlane.f32.xlu0 %v1438
        %v1440 = vpop.xlane.xlu0 %1439
        %v1441 = vadd.f32 %v1329, %v1394
        %1442 = vadd.xlane.f32.xlu0 %v1441
        %v1443 = vpop.xlane.xlu0 %1442
        %v1444 = vadd.f32 %v1332, %v1397
        %1445 = vadd.xlane.f32.xlu0 %v1444
        %v1446 = vpop.xlane.xlu0 %1445
        %v1447 = vadd.f32 %v1335, %v1400
        %1448 = vadd.xlane.f32.xlu0 %v1447
        %v1449 = vpop.xlane.xlu0 %1448
        %v1450 = vadd.f32 %v1338, %v1403
        %1451 = vadd.xlane.f32.xlu0 %v1450
        %v1452 = vpop.xlane.xlu0 %1451
        %v1453 = vadd.f32 %v1341, %v1406
        %1454 = vadd.xlane.f32.xlu0 %v1453
        %v1455 = vpop.xlane.xlu0 %1454
        %v1456 = vadd.f32 %v1344, %v1409
        %1457 = vadd.xlane.f32.xlu0 %v1456
        %v1458 = vpop.xlane.xlu0 %1457
        %v1459 = vadd.f32 %v1347, %v1412
        %1460 = vadd.xlane.f32.xlu0 %v1459
        %v1461 = vpop.xlane.xlu0 %1460
        %v1462 = vadd.f32 %v1350, %v1415
        %1463 = vadd.xlane.f32.xlu0 %v1462
        %v1464 = vpop.xlane.xlu0 %1463
        %v1465 = vadd.f32 %v1353, %v1418
        %1466 = vadd.xlane.f32.xlu0 %v1465
        %v1467 = vpop.xlane.xlu0 %1466
        %v1468 = vadd.f32 %v1356, %v1421
        %1469 = vadd.xlane.f32.xlu0 %v1468
        %v1470 = vpop.xlane.xlu0 %1469
        %v1471 = vadd.f32 %v1359, %v1424
        %1472 = vadd.xlane.f32.xlu0 %v1471
        %v1473 = vpop.xlane.xlu0 %1472
        %v1474 = vadd.f32 %v1362, %v1427
        %1475 = vadd.xlane.f32.xlu0 %v1474
        %v1476 = vpop.xlane.xlu0 %1475
        %v1477 = vadd.f32 %v1365, %v1430
        %1478 = vadd.xlane.f32.xlu0 %v1477
        %v1479 = vpop.xlane.xlu0 %1478
        %v1480 = vadd.f32 %v1368, %v1433
        %1481 = vadd.xlane.f32.xlu0 %v1480
        %v1482 = vpop.xlane.xlu0 %1481
        %v1483 = vmul.f32 %v1323, %v1323
        %v1484 = vmul.f32 %v1388, %v1388
        %v1485 = vmul.f32 %v1326, %v1326
        %v1486 = vmul.f32 %v1391, %v1391
        %v1487 = vmul.f32 %v1329, %v1329
        %v1488 = vmul.f32 %v1394, %v1394
        %v1489 = vmul.f32 %v1332, %v1332
        %v1490 = vmul.f32 %v1397, %v1397
        %v1491 = vmul.f32 %v1335, %v1335
        %v1492 = vmul.f32 %v1400, %v1400
        %v1493 = vmul.f32 %v1338, %v1338
        %v1494 = vmul.f32 %v1403, %v1403
        %v1495 = vmul.f32 %v1341, %v1341
        %v1496 = vmul.f32 %v1406, %v1406
        %v1497 = vmul.f32 %v1344, %v1344
        %v1498 = vmul.f32 %v1409, %v1409
        %v1499 = vmul.f32 %v1347, %v1347
        %v1500 = vmul.f32 %v1412, %v1412
        %v1501 = vmul.f32 %v1350, %v1350
        %v1502 = vmul.f32 %v1415, %v1415
        %v1503 = vmul.f32 %v1353, %v1353
        %v1504 = vmul.f32 %v1418, %v1418
        %v1505 = vmul.f32 %v1356, %v1356
        %v1506 = vmul.f32 %v1421, %v1421
        %v1507 = vmul.f32 %v1359, %v1359
        %v1508 = vmul.f32 %v1424, %v1424
        %v1509 = vmul.f32 %v1362, %v1362
        %v1510 = vmul.f32 %v1427, %v1427
        %v1511 = vmul.f32 %v1365, %v1365
        %v1512 = vmul.f32 %v1430, %v1430
        %v1513 = vmul.f32 %v1368, %v1368
        %v1514 = vmul.f32 %v1433, %v1433
        %v1515 = vadd.f32 %v1483, %v1484
        %1516 = vadd.xlane.f32.xlu0 %v1515
        %v1517 = vpop.xlane.xlu0 %1516
        %v1518 = vadd.f32 %v1485, %v1486
        %1519 = vadd.xlane.f32.xlu0 %v1518
        %v1520 = vpop.xlane.xlu0 %1519
        %v1521 = vadd.f32 %v1487, %v1488
        %1522 = vadd.xlane.f32.xlu0 %v1521
        %v1523 = vpop.xlane.xlu0 %1522
        %v1524 = vadd.f32 %v1489, %v1490
        %1525 = vadd.xlane.f32.xlu0 %v1524
        %v1526 = vpop.xlane.xlu0 %1525
        %v1527 = vadd.f32 %v1491, %v1492
        %1528 = vadd.xlane.f32.xlu0 %v1527
        %v1529 = vpop.xlane.xlu0 %1528
        %v1530 = vadd.f32 %v1493, %v1494
        %1531 = vadd.xlane.f32.xlu0 %v1530
        %v1532 = vpop.xlane.xlu0 %1531
        %v1533 = vadd.f32 %v1495, %v1496
        %1534 = vadd.xlane.f32.xlu0 %v1533
        %v1535 = vpop.xlane.xlu0 %1534
        %v1536 = vadd.f32 %v1497, %v1498
        %1537 = vadd.xlane.f32.xlu0 %v1536
        %v1538 = vpop.xlane.xlu0 %1537
        %v1539 = vadd.f32 %v1499, %v1500
        %1540 = vadd.xlane.f32.xlu0 %v1539
        %v1541 = vpop.xlane.xlu0 %1540
        %v1542 = vadd.f32 %v1501, %v1502
        %1543 = vadd.xlane.f32.xlu0 %v1542
        %v1544 = vpop.xlane.xlu0 %1543
        %v1545 = vadd.f32 %v1503, %v1504
        %1546 = vadd.xlane.f32.xlu0 %v1545
        %v1547 = vpop.xlane.xlu0 %1546
        %v1548 = vadd.f32 %v1505, %v1506
        %1549 = vadd.xlane.f32.xlu0 %v1548
        %v1550 = vpop.xlane.xlu0 %1549
        %v1551 = vadd.f32 %v1507, %v1508
        %1552 = vadd.xlane.f32.xlu0 %v1551
        %v1553 = vpop.xlane.xlu0 %1552
        %v1554 = vadd.f32 %v1509, %v1510
        %1555 = vadd.xlane.f32.xlu0 %v1554
        %v1556 = vpop.xlane.xlu0 %1555
        %v1557 = vadd.f32 %v1511, %v1512
        %1558 = vadd.xlane.f32.xlu0 %v1557
        %v1559 = vpop.xlane.xlu0 %1558
        %v1560 = vadd.f32 %v1513, %v1514
        %1561 = vadd.xlane.f32.xlu0 %v1560
        %v1562 = vpop.xlane.xlu0 %1561
        %v1563 = vmul.f32 %v1437, 0.00390625
        %v1564 = vmul.f32 %v1440, 0.00390625
        %v1565 = vmul.f32 %v1443, 0.00390625
        %v1566 = vmul.f32 %v1446, 0.00390625
        %v1567 = vmul.f32 %v1449, 0.00390625
        %v1568 = vmul.f32 %v1452, 0.00390625
        %v1569 = vmul.f32 %v1455, 0.00390625
        %v1570 = vmul.f32 %v1458, 0.00390625
        %v1571 = vmul.f32 %v1461, 0.00390625
        %v1572 = vmul.f32 %v1464, 0.00390625
        %v1573 = vmul.f32 %v1467, 0.00390625
        %v1574 = vmul.f32 %v1470, 0.00390625
        %v1575 = vmul.f32 %v1473, 0.00390625
        %v1576 = vmul.f32 %v1476, 0.00390625
        %v1577 = vmul.f32 %v1479, 0.00390625
        %v1578 = vmul.f32 %v1482, 0.00390625
        %v1579 = vmul.f32 %v1517, 0.00390625
        %v1580 = vmul.f32 %v1520, 0.00390625
        %v1581 = vmul.f32 %v1523, 0.00390625
        %v1582 = vmul.f32 %v1526, 0.00390625
        %v1583 = vmul.f32 %v1529, 0.00390625
        %v1584 = vmul.f32 %v1532, 0.00390625
        %v1585 = vmul.f32 %v1535, 0.00390625
        %v1586 = vmul.f32 %v1538, 0.00390625
        %v1587 = vmul.f32 %v1541, 0.00390625
        %v1588 = vmul.f32 %v1544, 0.00390625
        %v1589 = vmul.f32 %v1547, 0.00390625
        %v1590 = vmul.f32 %v1550, 0.00390625
        %v1591 = vmul.f32 %v1553, 0.00390625
        %v1592 = vmul.f32 %v1556, 0.00390625
        %v1593 = vmul.f32 %v1559, 0.00390625
        %v1594 = vmul.f32 %v1562, 0.00390625
        %v1595 = vmul.f32 %v1563, %v1563
        %v1596 = vmul.f32 %v1564, %v1564
        %v1597 = vmul.f32 %v1565, %v1565
        %v1598 = vmul.f32 %v1566, %v1566
        %v1599 = vmul.f32 %v1567, %v1567
        %v1600 = vmul.f32 %v1568, %v1568
        %v1601 = vmul.f32 %v1569, %v1569
        %v1602 = vmul.f32 %v1570, %v1570
        %v1603 = vmul.f32 %v1571, %v1571
        %v1604 = vmul.f32 %v1572, %v1572
        %v1605 = vmul.f32 %v1573, %v1573
        %v1606 = vmul.f32 %v1574, %v1574
        %v1607 = vmul.f32 %v1575, %v1575
        %v1608 = vmul.f32 %v1576, %v1576
        %v1609 = vmul.f32 %v1577, %v1577
        %v1610 = vmul.f32 %v1578, %v1578
        %v1611 = vsub.f32 %v1579, %v1595
        %v1612 = vsub.f32 %v1580, %v1596
        %v1613 = vsub.f32 %v1581, %v1597
        %v1614 = vsub.f32 %v1582, %v1598
        %v1615 = vsub.f32 %v1583, %v1599
        %v1616 = vsub.f32 %v1584, %v1600
        %v1617 = vsub.f32 %v1585, %v1601
        %v1618 = vsub.f32 %v1586, %v1602
        %v1619 = vsub.f32 %v1587, %v1603
        %v1620 = vsub.f32 %v1588, %v1604
        %v1621 = vsub.f32 %v1589, %v1605
        %v1622 = vsub.f32 %v1590, %v1606
        %v1623 = vsub.f32 %v1591, %v1607
        %v1624 = vsub.f32 %v1592, %v1608
        %v1625 = vsub.f32 %v1593, %v1609
        %v1626 = vsub.f32 %v1594, %v1610
        %v1627 = vmax.f32 %v1611, 0.0
        %v1628 = vmax.f32 %v1612, 0.0
        %v1629 = vmax.f32 %v1613, 0.0
        %v1630 = vmax.f32 %v1614, 0.0
        %v1631 = vmax.f32 %v1615, 0.0
        %v1632 = vmax.f32 %v1616, 0.0
        %v1633 = vmax.f32 %v1617, 0.0
        %v1634 = vmax.f32 %v1618, 0.0
        %v1635 = vmax.f32 %v1619, 0.0
        %v1636 = vmax.f32 %v1620, 0.0
        %v1637 = vmax.f32 %v1621, 0.0
        %v1638 = vmax.f32 %v1622, 0.0
        %v1639 = vmax.f32 %v1623, 0.0
        %v1640 = vmax.f32 %v1624, 0.0
        %v1641 = vmax.f32 %v1625, 0.0
        %v1642 = vmax.f32 %v1626, 0.0
        %v1643 = vsub.f32 %v1323, %v1563
        %v1644 = vsub.f32 %v1388, %v1563
        %v1645 = vsub.f32 %v1326, %v1564
        %v1646 = vsub.f32 %v1391, %v1564
        %v1647 = vsub.f32 %v1329, %v1565
        %v1648 = vsub.f32 %v1394, %v1565
        %v1649 = vsub.f32 %v1332, %v1566
        %v1650 = vsub.f32 %v1397, %v1566
        %v1651 = vsub.f32 %v1335, %v1567
        %v1652 = vsub.f32 %v1400, %v1567
        %v1653 = vsub.f32 %v1338, %v1568
        %v1654 = vsub.f32 %v1403, %v1568
        %v1655 = vsub.f32 %v1341, %v1569
        %v1656 = vsub.f32 %v1406, %v1569
        %v1657 = vsub.f32 %v1344, %v1570
        %v1658 = vsub.f32 %v1409, %v1570
        %v1659 = vsub.f32 %v1347, %v1571
        %v1660 = vsub.f32 %v1412, %v1571
        %v1661 = vsub.f32 %v1350, %v1572
        %v1662 = vsub.f32 %v1415, %v1572
        %v1663 = vsub.f32 %v1353, %v1573
        %v1664 = vsub.f32 %v1418, %v1573
        %v1665 = vsub.f32 %v1356, %v1574
        %v1666 = vsub.f32 %v1421, %v1574
        %v1667 = vsub.f32 %v1359, %v1575
        %v1668 = vsub.f32 %v1424, %v1575
        %v1669 = vsub.f32 %v1362, %v1576
        %v1670 = vsub.f32 %v1427, %v1576
        %v1671 = vsub.f32 %v1365, %v1577
        %v1672 = vsub.f32 %v1430, %v1577
        %v1673 = vsub.f32 %v1368, %v1578
        %v1674 = vsub.f32 %v1433, %v1578
        %v1675 = vadd.f32 %v1627, 1e-05
        %v1676 = vadd.f32 %v1628, 1e-05
        %v1677 = vadd.f32 %v1629, 1e-05
        %v1678 = vadd.f32 %v1630, 1e-05
        %v1679 = vadd.f32 %v1631, 1e-05
        %v1680 = vadd.f32 %v1632, 1e-05
        %v1681 = vadd.f32 %v1633, 1e-05
        %v1682 = vadd.f32 %v1634, 1e-05
        %v1683 = vadd.f32 %v1635, 1e-05
        %v1684 = vadd.f32 %v1636, 1e-05
        %v1685 = vadd.f32 %v1637, 1e-05
        %v1686 = vadd.f32 %v1638, 1e-05
        %v1687 = vadd.f32 %v1639, 1e-05
        %v1688 = vadd.f32 %v1640, 1e-05
        %v1689 = vadd.f32 %v1641, 1e-05
        %v1690 = vadd.f32 %v1642, 1e-05
        %v1691 = vrsqrt.pop %v1675
        %v1692 = vmul.f32 %v1691, %v1675
        %v1693 = vmul.f32 %v1692, %v1691
        %v1694 = vmul.f32 0.5, %v1693
        %v1695 = vsub.f32 1.5, %v1694
        %v1696 = vmul.f32 %v1691, %v1695
        %vm1697 = vweird.f32 %v1675
        %vm1698 = vweird.f32 %v1691
        %vm1699 = vmor %vm1697, %vm1698
        %v1700 = vsel %vm1699, %v1691, %v1696
        %v1701 = vrsqrt.pop %v1676
        %v1702 = vmul.f32 %v1701, %v1676
        %v1703 = vmul.f32 %v1702, %v1701
        %v1704 = vmul.f32 0.5, %v1703
        %v1705 = vsub.f32 1.5, %v1704
        %v1706 = vmul.f32 %v1701, %v1705
        %vm1707 = vweird.f32 %v1676
        %vm1708 = vweird.f32 %v1701
        %vm1709 = vmor %vm1707, %vm1708
        %v1710 = vsel %vm1709, %v1701, %v1706
        %v1711 = vrsqrt.pop %v1677
        %v1712 = vmul.f32 %v1711, %v1677
        %v1713 = vmul.f32 %v1712, %v1711
        %v1714 = vmul.f32 0.5, %v1713
        %v1715 = vsub.f32 1.5, %v1714
        %v1716 = vmul.f32 %v1711, %v1715
        %vm1717 = vweird.f32 %v1677
        %vm1718 = vweird.f32 %v1711
        %vm1719 = vmor %vm1717, %vm1718
        %v1720 = vsel %vm1719, %v1711, %v1716
        %v1721 = vrsqrt.pop %v1678
        %v1722 = vmul.f32 %v1721, %v1678
        %v1723 = vmul.f32 %v1722, %v1721
        %v1724 = vmul.f32 0.5, %v1723
        %v1725 = vsub.f32 1.5, %v1724
        %v1726 = vmul.f32 %v1721, %v1725
        %vm1727 = vweird.f32 %v1678
        %vm1728 = vweird.f32 %v1721
        %vm1729 = vmor %vm1727, %vm1728
        %v1730 = vsel %vm1729, %v1721, %v1726
        %v1731 = vrsqrt.pop %v1679
        %v1732 = vmul.f32 %v1731, %v1679
        %v1733 = vmul.f32 %v1732, %v1731
        %v1734 = vmul.f32 0.5, %v1733
        %v1735 = vsub.f32 1.5, %v1734
        %v1736 = vmul.f32 %v1731, %v1735
        %vm1737 = vweird.f32 %v1679
        %vm1738 = vweird.f32 %v1731
        %vm1739 = vmor %vm1737, %vm1738
        %v1740 = vsel %vm1739, %v1731, %v1736
        %v1741 = vrsqrt.pop %v1680
        %v1742 = vmul.f32 %v1741, %v1680
        %v1743 = vmul.f32 %v1742, %v1741
        %v1744 = vmul.f32 0.5, %v1743
        %v1745 = vsub.f32 1.5, %v1744
        %v1746 = vmul.f32 %v1741, %v1745
        %vm1747 = vweird.f32 %v1680
        %vm1748 = vweird.f32 %v1741
        %vm1749 = vmor %vm1747, %vm1748
        %v1750 = vsel %vm1749, %v1741, %v1746
        %v1751 = vrsqrt.pop %v1681
        %v1752 = vmul.f32 %v1751, %v1681
        %v1753 = vmul.f32 %v1752, %v1751
        %v1754 = vmul.f32 0.5, %v1753
        %v1755 = vsub.f32 1.5, %v1754
        %v1756 = vmul.f32 %v1751, %v1755
        %vm1757 = vweird.f32 %v1681
        %vm1758 = vweird.f32 %v1751
        %vm1759 = vmor %vm1757, %vm1758
        %v1760 = vsel %vm1759, %v1751, %v1756
        %v1761 = vrsqrt.pop %v1682
        %v1762 = vmul.f32 %v1761, %v1682
        %v1763 = vmul.f32 %v1762, %v1761
        %v1764 = vmul.f32 0.5, %v1763
        %v1765 = vsub.f32 1.5, %v1764
        %v1766 = vmul.f32 %v1761, %v1765
        %vm1767 = vweird.f32 %v1682
        %vm1768 = vweird.f32 %v1761
        %vm1769 = vmor %vm1767, %vm1768
        %v1770 = vsel %vm1769, %v1761, %v1766
        %v1771 = vrsqrt.pop %v1683
        %v1772 = vmul.f32 %v1771, %v1683
        %v1773 = vmul.f32 %v1772, %v1771
        %v1774 = vmul.f32 0.5, %v1773
        %v1775 = vsub.f32 1.5, %v1774
        %v1776 = vmul.f32 %v1771, %v1775
        %vm1777 = vweird.f32 %v1683
        %vm1778 = vweird.f32 %v1771
        %vm1779 = vmor %vm1777, %vm1778
        %v1780 = vsel %vm1779, %v1771, %v1776
        %v1781 = vrsqrt.pop %v1684
        %v1782 = vmul.f32 %v1781, %v1684
        %v1783 = vmul.f32 %v1782, %v1781
        %v1784 = vmul.f32 0.5, %v1783
        %v1785 = vsub.f32 1.5, %v1784
        %v1786 = vmul.f32 %v1781, %v1785
        %vm1787 = vweird.f32 %v1684
        %vm1788 = vweird.f32 %v1781
        %vm1789 = vmor %vm1787, %vm1788
        %v1790 = vsel %vm1789, %v1781, %v1786
        %v1791 = vrsqrt.pop %v1685
        %v1792 = vmul.f32 %v1791, %v1685
        %v1793 = vmul.f32 %v1792, %v1791
        %v1794 = vmul.f32 0.5, %v1793
        %v1795 = vsub.f32 1.5, %v1794
        %v1796 = vmul.f32 %v1791, %v1795
        %vm1797 = vweird.f32 %v1685
        %vm1798 = vweird.f32 %v1791
        %vm1799 = vmor %vm1797, %vm1798
        %v1800 = vsel %vm1799, %v1791, %v1796
        %v1801 = vrsqrt.pop %v1686
        %v1802 = vmul.f32 %v1801, %v1686
        %v1803 = vmul.f32 %v1802, %v1801
        %v1804 = vmul.f32 0.5, %v1803
        %v1805 = vsub.f32 1.5, %v1804
        %v1806 = vmul.f32 %v1801, %v1805
        %vm1807 = vweird.f32 %v1686
        %vm1808 = vweird.f32 %v1801
        %vm1809 = vmor %vm1807, %vm1808
        %v1810 = vsel %vm1809, %v1801, %v1806
        %v1811 = vrsqrt.pop %v1687
        %v1812 = vmul.f32 %v1811, %v1687
        %v1813 = vmul.f32 %v1812, %v1811
        %v1814 = vmul.f32 0.5, %v1813
        %v1815 = vsub.f32 1.5, %v1814
        %v1816 = vmul.f32 %v1811, %v1815
        %vm1817 = vweird.f32 %v1687
        %vm1818 = vweird.f32 %v1811
        %vm1819 = vmor %vm1817, %vm1818
        %v1820 = vsel %vm1819, %v1811, %v1816
        %v1821 = vrsqrt.pop %v1688
        %v1822 = vmul.f32 %v1821, %v1688
        %v1823 = vmul.f32 %v1822, %v1821
        %v1824 = vmul.f32 0.5, %v1823
        %v1825 = vsub.f32 1.5, %v1824
        %v1826 = vmul.f32 %v1821, %v1825
        %vm1827 = vweird.f32 %v1688
        %vm1828 = vweird.f32 %v1821
        %vm1829 = vmor %vm1827, %vm1828
        %v1830 = vsel %vm1829, %v1821, %v1826
        %v1831 = vrsqrt.pop %v1689
        %v1832 = vmul.f32 %v1831, %v1689
        %v1833 = vmul.f32 %v1832, %v1831
        %v1834 = vmul.f32 0.5, %v1833
        %v1835 = vsub.f32 1.5, %v1834
        %v1836 = vmul.f32 %v1831, %v1835
        %vm1837 = vweird.f32 %v1689
        %vm1838 = vweird.f32 %v1831
        %vm1839 = vmor %vm1837, %vm1838
        %v1840 = vsel %vm1839, %v1831, %v1836
        %v1841 = vrsqrt.pop %v1690
        %v1842 = vmul.f32 %v1841, %v1690
        %v1843 = vmul.f32 %v1842, %v1841
        %v1844 = vmul.f32 0.5, %v1843
        %v1845 = vsub.f32 1.5, %v1844
        %v1846 = vmul.f32 %v1841, %v1845
        %vm1847 = vweird.f32 %v1690
        %vm1848 = vweird.f32 %v1841
        %vm1849 = vmor %vm1847, %vm1848
        %v1850 = vsel %vm1849, %v1841, %v1846
        %v1851 = vmul.f32 %v1643, %v1700
        %v1852 = vmul.f32 %v1644, %v1700
        %v1853 = vmul.f32 %v1645, %v1710
        %v1854 = vmul.f32 %v1646, %v1710
        %v1855 = vmul.f32 %v1647, %v1720
        %v1856 = vmul.f32 %v1648, %v1720
        %v1857 = vmul.f32 %v1649, %v1730
        %v1858 = vmul.f32 %v1650, %v1730
        %v1859 = vmul.f32 %v1651, %v1740
        %v1860 = vmul.f32 %v1652, %v1740
        %v1861 = vmul.f32 %v1653, %v1750
        %v1862 = vmul.f32 %v1654, %v1750
        %v1863 = vmul.f32 %v1655, %v1760
        %v1864 = vmul.f32 %v1656, %v1760
        %v1865 = vmul.f32 %v1657, %v1770
        %v1866 = vmul.f32 %v1658, %v1770
        %v1867 = vmul.f32 %v1659, %v1780
        %v1868 = vmul.f32 %v1660, %v1780
        %v1869 = vmul.f32 %v1661, %v1790
        %v1870 = vmul.f32 %v1662, %v1790
        %v1871 = vmul.f32 %v1663, %v1800
        %v1872 = vmul.f32 %v1664, %v1800
        %v1873 = vmul.f32 %v1665, %v1810
        %v1874 = vmul.f32 %v1666, %v1810
        %v1875 = vmul.f32 %v1667, %v1820
        %v1876 = vmul.f32 %v1668, %v1820
        %v1877 = vmul.f32 %v1669, %v1830
        %v1878 = vmul.f32 %v1670, %v1830
        %v1879 = vmul.f32 %v1671, %v1840
        %v1880 = vmul.f32 %v1672, %v1840
        %v1881 = vmul.f32 %v1673, %v1850
        %v1882 = vmul.f32 %v1674, %v1850
        %v1883 = vmul.f32 %v1851, %v970
        %v1884 = vmul.f32 %v1852, %v971
        %v1885 = vmul.f32 %v1853, %v970
        %v1886 = vmul.f32 %v1854, %v971
        %v1887 = vmul.f32 %v1855, %v970
        %v1888 = vmul.f32 %v1856, %v971
        %v1889 = vmul.f32 %v1857, %v970
        %v1890 = vmul.f32 %v1858, %v971
        %v1891 = vmul.f32 %v1859, %v970
        %v1892 = vmul.f32 %v1860, %v971
        %v1893 = vmul.f32 %v1861, %v970
        %v1894 = vmul.f32 %v1862, %v971
        %v1895 = vmul.f32 %v1863, %v970
        %v1896 = vmul.f32 %v1864, %v971
        %v1897 = vmul.f32 %v1865, %v970
        %v1898 = vmul.f32 %v1866, %v971
        %v1899 = vmul.f32 %v1867, %v970
        %v1900 = vmul.f32 %v1868, %v971
        %v1901 = vmul.f32 %v1869, %v970
        %v1902 = vmul.f32 %v1870, %v971
        %v1903 = vmul.f32 %v1871, %v970
        %v1904 = vmul.f32 %v1872, %v971
        %v1905 = vmul.f32 %v1873, %v970
        %v1906 = vmul.f32 %v1874, %v971
        %v1907 = vmul.f32 %v1875, %v970
        %v1908 = vmul.f32 %v1876, %v971
        %v1909 = vmul.f32 %v1877, %v970
        %v1910 = vmul.f32 %v1878, %v971
        %v1911 = vmul.f32 %v1879, %v970
        %v1912 = vmul.f32 %v1880, %v971
        %v1913 = vmul.f32 %v1881, %v970
        %v1914 = vmul.f32 %v1882, %v971
        %v1915 = vadd.f32 %v1883, %v1007
        %v1916 = vadd.f32 %v1884, %v1008
        %v1917 = vadd.f32 %v1885, %v1007
        %v1918 = vadd.f32 %v1886, %v1008
        %v1919 = vadd.f32 %v1887, %v1007
        %v1920 = vadd.f32 %v1888, %v1008
        %v1921 = vadd.f32 %v1889, %v1007
        %v1922 = vadd.f32 %v1890, %v1008
        %v1923 = vadd.f32 %v1891, %v1007
        %v1924 = vadd.f32 %v1892, %v1008
        %v1925 = vadd.f32 %v1893, %v1007
        %v1926 = vadd.f32 %v1894, %v1008
        %v1927 = vadd.f32 %v1895, %v1007
        %v1928 = vadd.f32 %v1896, %v1008
        %v1929 = vadd.f32 %v1897, %v1007
        %v1930 = vadd.f32 %v1898, %v1008
        %v1931 = vadd.f32 %v1899, %v1007
        %v1932 = vadd.f32 %v1900, %v1008
        %v1933 = vadd.f32 %v1901, %v1007
        %v1934 = vadd.f32 %v1902, %v1008
        %v1935 = vadd.f32 %v1903, %v1007
        %v1936 = vadd.f32 %v1904, %v1008
        %v1937 = vadd.f32 %v1905, %v1007
        %v1938 = vadd.f32 %v1906, %v1008
        %v1939 = vadd.f32 %v1907, %v1007
        %v1940 = vadd.f32 %v1908, %v1008
        %v1941 = vadd.f32 %v1909, %v1007
        %v1942 = vadd.f32 %v1910, %v1008
        %v1943 = vadd.f32 %v1911, %v1007
        %v1944 = vadd.f32 %v1912, %v1008
        %v1945 = vadd.f32 %v1913, %v1007
        %v1946 = vadd.f32 %v1914, %v1008
        %v1947 = vmax.f32 %v1915, 0.0
        %v1948 = vmax.f32 %v1916, 0.0
        %v1949 = vmax.f32 %v1917, 0.0
        %v1950 = vmax.f32 %v1918, 0.0
        %v1951 = vmax.f32 %v1919, 0.0
        %v1952 = vmax.f32 %v1920, 0.0
        %v1953 = vmax.f32 %v1921, 0.0
        %v1954 = vmax.f32 %v1922, 0.0
        %v1955 = vmax.f32 %v1923, 0.0
        %v1956 = vmax.f32 %v1924, 0.0
        %v1957 = vmax.f32 %v1925, 0.0
        %v1958 = vmax.f32 %v1926, 0.0
        %v1959 = vmax.f32 %v1927, 0.0
        %v1960 = vmax.f32 %v1928, 0.0
        %v1961 = vmax.f32 %v1929, 0.0
        %v1962 = vmax.f32 %v1930, 0.0
        %v1963 = vmax.f32 %v1931, 0.0
        %v1964 = vmax.f32 %v1932, 0.0
        %v1965 = vmax.f32 %v1933, 0.0
        %v1966 = vmax.f32 %v1934, 0.0
        %v1967 = vmax.f32 %v1935, 0.0
        %v1968 = vmax.f32 %v1936, 0.0
        %v1969 = vmax.f32 %v1937, 0.0
        %v1970 = vmax.f32 %v1938, 0.0
        %v1971 = vmax.f32 %v1939, 0.0
        %v1972 = vmax.f32 %v1940, 0.0
        %v1973 = vmax.f32 %v1941, 0.0
        %v1974 = vmax.f32 %v1942, 0.0
        %v1975 = vmax.f32 %v1943, 0.0
        %v1976 = vmax.f32 %v1944, 0.0
        %v1977 = vmax.f32 %v1945, 0.0
        %v1978 = vmax.f32 %v1946, 0.0
        %v1979 = vld [vmem:[#allocation7] sm:$0xff]
        %v1980 = vld [vmem:[#allocation7 + $0x8] sm:$0xff]
        %v1981 = vld [vmem:[#allocation7 + $0x10] sm:$0xff]
        %v1982 = vld [vmem:[#allocation7 + $0x18] sm:$0xff]
        %v1983 = vld [vmem:[#allocation7 + $0x20] sm:$0xff]
        %v1984 = vld [vmem:[#allocation7 + $0x28] sm:$0xff]
        %v1985 = vld [vmem:[#allocation7 + $0x30] sm:$0xff]
        %v1986 = vld [vmem:[#allocation7 + $0x38] sm:$0xff]
        %v1987 = vld [vmem:[#allocation7 + $0x40] sm:$0xff]
        %v1988 = vld [vmem:[#allocation7 + $0x48] sm:$0xff]
        %v1989 = vld [vmem:[#allocation7 + $0x50] sm:$0xff]
        %v1990 = vld [vmem:[#allocation7 + $0x58] sm:$0xff]
        %v1991 = vld [vmem:[#allocation7 + $0x60] sm:$0xff]
        %v1992 = vld [vmem:[#allocation7 + $0x68] sm:$0xff]
        %v1993 = vld [vmem:[#allocation7 + $0x70] sm:$0xff]
        %v1994 = vld [vmem:[#allocation7 + $0x78] sm:$0xff]
        %v1995 = vld [vmem:[#allocation7 + $0x80] sm:$0xff]
        %v1996 = vld [vmem:[#allocation7 + $0x88] sm:$0xff]
        %v1997 = vld [vmem:[#allocation7 + $0x90] sm:$0xff]
        %v1998 = vld [vmem:[#allocation7 + $0x98] sm:$0xff]
        %v1999 = vld [vmem:[#allocation7 + $0xa0] sm:$0xff]
        %v2000 = vld [vmem:[#allocation7 + $0xa8] sm:$0xff]
        %v2001 = vld [vmem:[#allocation7 + $0xb0] sm:$0xff]
        %v2002 = vld [vmem:[#allocation7 + $0xb8] sm:$0xff]
        %v2003 = vld [vmem:[#allocation7 + $0xc0] sm:$0xff]
        %v2004 = vld [vmem:[#allocation7 + $0xc8] sm:$0xff]
        %v2005 = vld [vmem:[#allocation7 + $0xd0] sm:$0xff]
        %v2006 = vld [vmem:[#allocation7 + $0xd8] sm:$0xff]
        %v2007 = vld [vmem:[#allocation7 + $0xe0] sm:$0xff]
        %v2008 = vld [vmem:[#allocation7 + $0xe8] sm:$0xff]
        %v2009 = vld [vmem:[#allocation7 + $0xf0] sm:$0xff]
        %v2010 = vld [vmem:[#allocation7 + $0xf8] sm:$0xff]
        %2011 = vmatpush.msra.mxu0 %v1994
        %2012 = vmatpush.msra.mxu0 %v1993
        %2013 = vmatpush.msra.mxu0 %v1992
        %2014 = vmatpush.msra.mxu0 %v1991
        %2015 = vmatpush.msra.mxu0 %v1990
        %2016 = vmatpush.msra.mxu0 %v1989
        %2017 = vmatpush.msra.mxu0 %v1988
        %2018 = vmatpush.msra.mxu0 %v1987
        %2019 = vmatpush.msra.mxu0 %v1986
        %2020 = vmatpush.msra.mxu0 %v1985
        %2021 = vmatpush.msra.mxu0 %v1984
        %2022 = vmatpush.msra.mxu0 %v1983
        %2023 = vmatpush.msra.mxu0 %v1982
        %2024 = vmatpush.msra.mxu0 %v1981
        %2025 = vmatpush.msra.mxu0 %v1980
        %2026 = vmatpush.msra.mxu0 %v1979
        %2027 = vmatmul.f32.gmra.mxu0 %v1947
        %v2028 = vpop.f32.mrf.mxu0
        %v2029 = vadd.f32 %v1108, %v2028
        %2030 = vmatmul.f32.gmra.mxu0 %v1949
        %v2031 = vpop.f32.mrf.mxu0
        %v2032 = vadd.f32 %v1108, %v2031
        %2033 = vmatmul.f32.gmra.mxu0 %v1951
        %v2034 = vpop.f32.mrf.mxu0
        %v2035 = vadd.f32 %v1108, %v2034
        %2036 = vmatmul.f32.gmra.mxu0 %v1953
        %v2037 = vpop.f32.mrf.mxu0
        %v2038 = vadd.f32 %v1108, %v2037
        %2039 = vmatmul.f32.gmra.mxu0 %v1955
        %v2040 = vpop.f32.mrf.mxu0
        %v2041 = vadd.f32 %v1108, %v2040
        %2042 = vmatmul.f32.gmra.mxu0 %v1957
        %v2043 = vpop.f32.mrf.mxu0
        %v2044 = vadd.f32 %v1108, %v2043
        %2045 = vmatmul.f32.gmra.mxu0 %v1959
        %v2046 = vpop.f32.mrf.mxu0
        %v2047 = vadd.f32 %v1108, %v2046
        %2048 = vmatmul.f32.gmra.mxu0 %v1961
        %v2049 = vpop.f32.mrf.mxu0
        %v2050 = vadd.f32 %v1108, %v2049
        %2051 = vmatmul.f32.gmra.mxu0 %v1963
        %v2052 = vpop.f32.mrf.mxu0
        %v2053 = vadd.f32 %v1108, %v2052
        %2054 = vmatmul.f32.gmra.mxu0 %v1965
        %v2055 = vpop.f32.mrf.mxu0
        %v2056 = vadd.f32 %v1108, %v2055
        %2057 = vmatmul.f32.gmra.mxu0 %v1967
        %v2058 = vpop.f32.mrf.mxu0
        %v2059 = vadd.f32 %v1108, %v2058
        %2060 = vmatmul.f32.gmra.mxu0 %v1969
        %v2061 = vpop.f32.mrf.mxu0
        %v2062 = vadd.f32 %v1108, %v2061
        %2063 = vmatmul.f32.gmra.mxu0 %v1971
        %v2064 = vpop.f32.mrf.mxu0
        %v2065 = vadd.f32 %v1108, %v2064
        %2066 = vmatmul.f32.gmra.mxu0 %v1973
        %v2067 = vpop.f32.mrf.mxu0
        %v2068 = vadd.f32 %v1108, %v2067
        %2069 = vmatmul.f32.gmra.mxu0 %v1975
        %v2070 = vpop.f32.mrf.mxu0
        %v2071 = vadd.f32 %v1108, %v2070
        %2072 = vmatmul.f32.gmra.mxu0 %v1977
        %v2073 = vpop.f32.mrf.mxu0
        %v2074 = vadd.f32 %v1108, %v2073
        %2075 = vdwg.mxu0
        %2076 = vmatpush.msra.mxu0 %v2010
        %2077 = vmatpush.msra.mxu0 %v2009
        %2078 = vmatpush.msra.mxu0 %v2008
        %2079 = vmatpush.msra.mxu0 %v2007
        %2080 = vmatpush.msra.mxu0 %v2006
        %2081 = vmatpush.msra.mxu0 %v2005
        %2082 = vmatpush.msra.mxu0 %v2004
        %2083 = vmatpush.msra.mxu0 %v2003
        %2084 = vmatpush.msra.mxu0 %v2002
        %2085 = vmatpush.msra.mxu0 %v2001
        %2086 = vmatpush.msra.mxu0 %v2000
        %2087 = vmatpush.msra.mxu0 %v1999
        %2088 = vmatpush.msra.mxu0 %v1998
        %2089 = vmatpush.msra.mxu0 %v1997
        %2090 = vmatpush.msra.mxu0 %v1996
        %2091 = vmatpush.msra.mxu0 %v1995
        %2092 = vmatmul.f32.gmra.mxu0 %v1948
        %v2093 = vpop.f32.mrf.mxu0
        %v2094 = vadd.f32 %v2029, %v2093
        %2095 = vmatmul.f32.gmra.mxu0 %v1950
        %v2096 = vpop.f32.mrf.mxu0
        %v2097 = vadd.f32 %v2032, %v2096
        %2098 = vmatmul.f32.gmra.mxu0 %v1952
        %v2099 = vpop.f32.mrf.mxu0
        %v2100 = vadd.f32 %v2035, %v2099
        %2101 = vmatmul.f32.gmra.mxu0 %v1954
        %v2102 = vpop.f32.mrf.mxu0
        %v2103 = vadd.f32 %v2038, %v2102
        %2104 = vmatmul.f32.gmra.mxu0 %v1956
        %v2105 = vpop.f32.mrf.mxu0
        %v2106 = vadd.f32 %v2041, %v2105
        %2107 = vmatmul.f32.gmra.mxu0 %v1958
        %v2108 = vpop.f32.mrf.mxu0
        %v2109 = vadd.f32 %v2044, %v2108
        %2110 = vmatmul.f32.gmra.mxu0 %v1960
        %v2111 = vpop.f32.mrf.mxu0
        %v2112 = vadd.f32 %v2047, %v2111
        %2113 = vmatmul.f32.gmra.mxu0 %v1962
        %v2114 = vpop.f32.mrf.mxu0
        %v2115 = vadd.f32 %v2050, %v2114
        %2116 = vmatmul.f32.gmra.mxu0 %v1964
        %v2117 = vpop.f32.mrf.mxu0
        %v2118 = vadd.f32 %v2053, %v2117
        %2119 = vmatmul.f32.gmra.mxu0 %v1966
        %v2120 = vpop.f32.mrf.mxu0
        %v2121 = vadd.f32 %v2056, %v2120
        %2122 = vmatmul.f32.gmra.mxu0 %v1968
        %v2123 = vpop.f32.mrf.mxu0
        %v2124 = vadd.f32 %v2059, %v2123
        %2125 = vmatmul.f32.gmra.mxu0 %v1970
        %v2126 = vpop.f32.mrf.mxu0
        %v2127 = vadd.f32 %v2062, %v2126
        %2128 = vmatmul.f32.gmra.mxu0 %v1972
        %v2129 = vpop.f32.mrf.mxu0
        %v2130 = vadd.f32 %v2065, %v2129
        %2131 = vmatmul.f32.gmra.mxu0 %v1974
        %v2132 = vpop.f32.mrf.mxu0
        %v2133 = vadd.f32 %v2068, %v2132
        %2134 = vmatmul.f32.gmra.mxu0 %v1976
        %v2135 = vpop.f32.mrf.mxu0
        %v2136 = vadd.f32 %v2071, %v2135
        %2137 = vmatmul.f32.gmra.mxu0 %v1978
        %v2138 = vpop.f32.mrf.mxu0
        %v2139 = vadd.f32 %v2074, %v2138
        %2140 = vdwg.mxu0
        %s2141 = scalar_lea.vmem %s331, 128 [#allocation8]
        %2142 = vst [vmem:[%s2141] sm:$0xff] %v2094
        %2143 = vst [vmem:[%s2141 + $0x8] sm:$0xff] %v2097
        %2144 = vst [vmem:[%s2141 + $0x10] sm:$0xff] %v2100
        %2145 = vst [vmem:[%s2141 + $0x18] sm:$0xff] %v2103
        %2146 = vst [vmem:[%s2141 + $0x20] sm:$0xff] %v2106
        %2147 = vst [vmem:[%s2141 + $0x28] sm:$0xff] %v2109
        %2148 = vst [vmem:[%s2141 + $0x30] sm:$0xff] %v2112
        %2149 = vst [vmem:[%s2141 + $0x38] sm:$0xff] %v2115
        %2150 = vst [vmem:[%s2141 + $0x40] sm:$0xff] %v2118
        %2151 = vst [vmem:[%s2141 + $0x48] sm:$0xff] %v2121
        %2152 = vst [vmem:[%s2141 + $0x50] sm:$0xff] %v2124
        %2153 = vst [vmem:[%s2141 + $0x58] sm:$0xff] %v2127
        %2154 = vst [vmem:[%s2141 + $0x60] sm:$0xff] %v2130
        %2155 = vst [vmem:[%s2141 + $0x68] sm:$0xff] %v2133
        %2156 = vst [vmem:[%s2141 + $0x70] sm:$0xff] %v2136
        %2157 = vst [vmem:[%s2141 + $0x78] sm:$0xff] %v2139
        %s2158 = sand.u32 %s185, 1
        %s2159 = scalar_lea.sflag [#allocation4], %s2158
        %s2160 = sand.u32 %s185, 1
        %s2161 = smul.addr %s2160, 256
        %s2162 = scalar_lea.vmem [#allocation8], %s2161
        // Predicated region
        $region61: #{mlp_head_bnm.1} parent=47 // pred_check
          %p2163 = pneg %p195
        $region62: #{mlp_head_bnm.1} parent=47 // pred_check_branch
          %2165 = sbr.rel (%p2163) target = $region64
        $region63: #{mlp_head_bnm.1} parent=47 // pred_region
          %s2166 = smul.u32 32, %s25
          %2168 = vsyncadd %s2159, 0
          %s2169 = smul.addr %s2166, 8
          %s2170 = scalar_lea.hbm %s7, %s2169
          %s2171 = sshll.u32 %s2162, 4
          %s2172 = int_to_ptr.vmem [resolvable:$true] %s2171
          %s2173 = sshll.u32 %s2170, 4
          %s2174 = int_to_ptr.hbm [resolvable:$true] %s2173
          %2179 = dma.vmem_to_hbm [thread:$0]  %s2172, 4096, %s2174, %s2159, 128, 128, 8
        $region64: #{mlp_head_bnm.1} parent=47 // pred_fallthru
          _
      $region48: #{mlp_head_bnm.1} parent=5 // pred_fallthru
        _
      %p2180 = scmp.le.s32.totalorder 2, %s20
      // Predicated region
      $region65: #{mlp_head_bnm.1} parent=5 // pred_check
        %p2181 = pneg %p2180
      $region66: #{mlp_head_bnm.1} parent=5 // pred_check_branch
        %2183 = sbr.rel (%p2181) target = $region68
      $region67: #{mlp_head_bnm.1} parent=5 // pred_region
        %s2184 = ssub.s32 %s20, 2
        // Predicated region
        $region69: #{mlp_head_bnm.1} parent=67 // pred_check
          %p2185 = pneg %p201
        $region70: #{mlp_head_bnm.1} parent=67 // pred_check_branch
          %2187 = sbr.rel (%p2185) target = $region72
        $region71: #{mlp_head_bnm.1} parent=67 // pred_region
          %s2188 = sand.u32 %s186, 1
          %s2189 = scalar_lea.sflag [#allocation4], %s2188
          %s2190 = sand.u32 %s186, 1
          %s2191 = smul.addr %s2190, 256
          %s2192 = scalar_lea.vmem [#allocation8], %s2191
          %2194 = dma.done %s2189, 4096
        $region72: #{mlp_head_bnm.1} parent=67 // pred_fallthru
          _
      $region68: #{mlp_head_bnm.1} parent=5 // pred_fallthru
        _
    $region6: #{mlp_head_bnm.1} parent=1 // loop_footer
      %s24 = sadd.s32 1, %s20
    $region7: #{mlp_head_bnm.1} parent=1 // loop_footer_branch
      %19 = sbr.rel target = $region3
    $region8: #{mlp_head_bnm.1} parent=1 // loop_exit
      _
    %2195 = vsyncpa [#allocation3], 1
    %s2196 = scalar_lea.sflag [#allocation3], 1
    %2197 = vsyncpa %s2196, 1
    %2198 = vsyncpa [#allocation6], 1
    %2199 = vsyncpa [#allocation4], 1
    %s2200 = scalar_lea.sflag [#allocation4], 1
    %2201 = vsyncpa %s2200, 1

</llo_original>
